<compile_context>
chip_gen: v5e
topology: v5e:2x2
jax: 0.10.0
libtpu: 0.0.40
codegen_flags: <defaults>
</compile_context>

<pallas_src>
import jax
import jax.numpy as jnp
import numpy as np
from jax.experimental import pallas as pl
from jax.experimental.pallas import tpu as pltpu

# ----- ModelArgs (small, consistent with the module's __post_init__) -----
D_MODEL = 32
EXPAND = 2
D_INNER = EXPAND * D_MODEL          # 64
D_STATE = 16
DT_RANK = 2                         # ceil(32 / 16)
D_CONV = 4
SEQ_LEN = 8
BATCH = 2
SKIP = "Gating"                     # 'Gating' | 'Additive' | 'No Skip'
SKIP_STRENGTH = 1.0
REMOVE_CONV = False
EPS = 1e-5

BD_INNER = BATCH * D_INNER          # 128  (batch folded into lanes)
BD_MODEL = BATCH * D_MODEL          # 64


def residual_block_kernel(x_ref, w_in_x_ref, w_in_r_ref, conv_w_ref, conv_b_ref,
                          w_delta_ref, w_b_ref, w_c_ref, b_dt_ref,
                          a_ref, d_ref, w_out_ref, rms_w_ref, p_avg_ref,
                          o_ref,
                          pad_ref, da_ref, dbu_ref, cbr_ref, y_acc_ref):
    f32 = jnp.float32

    # ---- input is already batch-folded in the wrapper: x_f[i, b*D + k] = x[b, i, k]
    x_f = x_ref[...]                                                   # (L, B*D_MODEL)

    # ---- in_proj (pre-split, block-diagonal per batch -> lane-aligned outputs) ----
    xi_f = jnp.dot(x_f, w_in_x_ref[...], preferred_element_type=f32)   # (L, B*D_INNER)
    res_f = jnp.dot(x_f, w_in_r_ref[...], preferred_element_type=f32)  # (L, B*D_INNER)

    # ---- depthwise causal conv1d along L (batch lives in lanes -> per-batch causal) ----
    if not REMOVE_CONV:
        pad_ref[0:D_CONV - 1, :] = jnp.zeros((D_CONV - 1, BD_INNER), f32)
        pad_ref[D_CONV - 1:, :] = xi_f
        conv = jnp.zeros((SEQ_LEN, BD_INNER), f32) + conv_b_ref[...]
        for k in range(D_CONV):                       # 4 static row slices of the padded copy
            conv = conv + pad_ref[k:k + SEQ_LEN, :] * conv_w_ref[k:k + 1, :]
        xc_f = conv * jax.nn.sigmoid(conv)            # SiLU
    else:
        xc_f = xi_f

    # ---- x_proj (split weights, block-diag keeps the folded layout) ----
    # dt_proj is fused into the delta branch: W_delta = W_xp_dtr @ W_dt (precomputed).
    delta_f = jax.nn.softplus(
        jnp.dot(xc_f, w_delta_ref[...], preferred_element_type=f32) + b_dt_ref[...])
    bm_f = jnp.dot(xc_f, w_b_ref[...], preferred_element_type=f32)     # (L, B*D_STATE)
    cm_f = jnp.dot(xc_f, w_c_ref[...], preferred_element_type=f32)     # (L, B*D_STATE)

    # ---- hoist all scan-invariant work out of the recurrence ----
    du_f = delta_f * xc_f                             # (L, B*D_INNER)
    a_bt = a_ref[...]                                 # (D_STATE, B*D_INNER), A = -exp(A_log).T tiled
    bt = [bm_f[:, b * D_STATE:(b + 1) * D_STATE].T for b in range(BATCH)]   # (D_STATE, L)
    ct = [cm_f[:, b * D_STATE:(b + 1) * D_STATE].T for b in range(BATCH)]
    for i in range(SEQ_LEN):
        da_ref[i] = jnp.exp(delta_f[i:i + 1, :] * a_bt)                     # (D_STATE, B*D_INNER)
        b_col = jnp.concatenate(
            [jnp.broadcast_to(bt[b][:, i:i + 1], (D_STATE, D_INNER))
             for b in range(BATCH)], axis=1)
        cbr_ref[i] = jnp.concatenate(
            [jnp.broadcast_to(ct[b][:, i:i + 1], (D_STATE, D_INNER))
             for b in range(BATCH)], axis=1)
        dbu_ref[i] = du_f[i:i + 1, :] * b_col

    # ---- selective scan: serial chain is only h = dA*h + dBu (both batches at once) ----
    h = jnp.zeros((D_STATE, BD_INNER), f32)
    for i in range(SEQ_LEN):
        h = da_ref[i] * h + dbu_ref[i]
        y_acc_ref[i:i + 1, :] = jnp.sum(h * cbr_ref[i], axis=0, keepdims=True)

    y_f = y_acc_ref[...] + xc_f * d_ref[...]          # + u * D

    # ---- skip inside the Mamba block ----
    if SKIP == "Gating":
        y_f = y_f * (res_f * jax.nn.sigmoid(res_f))   # y * silu(res)
    elif SKIP == "Additive":
        y_f = y_f + SKIP_STRENGTH * xc_f
    # 'No Skip': unchanged

    # ---- out_proj (block-diag) + outer residual + RMSNorm (per-batch mean via matmul) ----
    out_f = jnp.dot(y_f, w_out_ref[...], preferred_element_type=f32) + x_f   # (L, B*D_MODEL)
    ms_f = jnp.dot(out_f * out_f, p_avg_ref[...], preferred_element_type=f32)
    o_ref[...] = out_f * jax.lax.rsqrt(ms_f + EPS) * rms_w_ref[...]


def _block_diag(w, reps):
    r, c = w.shape
    out = jnp.zeros((reps * r, reps * c), w.dtype)
    for i in range(reps):
        out = out.at[i * r:(i + 1) * r, i * c:(i + 1) * c].set(w)
    return out


def prepare_kernel_params(params):
    """Split / transpose / fuse / batch-tile / block-diagonalize weights outside the kernel."""
    (w_in_T, conv_w, conv_b, w_xp_T, w_dt_T, b_dt,
     a_log, d_param, w_out_T, rms_w) = params
    B = BATCH
    w_in_x_bd = _block_diag(w_in_T[:, :D_INNER], B)                    # (B*d, B*d_in)
    w_in_r_bd = _block_diag(w_in_T[:, D_INNER:], B)
    conv_w_bt = jnp.tile(conv_w, (1, B))                               # (d_conv, B*d_in)
    conv_b_bt = jnp.tile(conv_b, (1, B))
    # fuse x_proj delta branch with dt_proj: (d_in, dt_rank) @ (dt_rank, d_in)
    w_delta = jnp.dot(w_xp_T[:, :DT_RANK], w_dt_T,
                      precision=jax.lax.Precision.HIGHEST)             # (d_in, d_in)
    w_delta_bd = _block_diag(w_delta, B)                               # (B*d_in, B*d_in)
    w_b_bd = _block_diag(w_xp_T[:, DT_RANK:DT_RANK + D_STATE], B)      # (B*d_in, B*n)
    w_c_bd = _block_diag(w_xp_T[:, DT_RANK + D_STATE:], B)
    b_dt_bt = jnp.tile(b_dt, (1, B))                                   # (1, B*d_in)
    a_bt = jnp.tile((-jnp.exp(a_log)).T, (1, B))                       # A precomputed, (n, B*d_in)
    d_bt = jnp.tile(d_param, (1, B))
    w_out_bd = _block_diag(w_out_T, B)                                 # (B*d_in, B*d)
    rms_w_bt = jnp.tile(rms_w, (1, B))
    p_avg = _block_diag(jnp.full((D_MODEL, D_MODEL), 1.0 / D_MODEL, jnp.float32), B)
    return (w_in_x_bd, w_in_r_bd, conv_w_bt, conv_b_bt, w_delta_bd, w_b_bd, w_c_bd,
            b_dt_bt, a_bt, d_bt, w_out_bd, rms_w_bt, p_avg)


def residual_block(x, params):
    b, l, d = x.shape
    assert (b, l, d) == (BATCH, SEQ_LEN, D_MODEL)
    kparams = prepare_kernel_params(params)

    # fold batch into lanes outside the kernel (lane-dense kernel input/output)
    x_f = jnp.transpose(x, (1, 0, 2)).reshape(l, b * d)                # (L, B*D_MODEL)

    in_specs = [pl.BlockSpec((l, b * d), lambda i: (0, 0))]
    for p in kparams:
        in_specs.append(pl.BlockSpec(p.shape, lambda i, nd=p.ndim: (0,) * nd))

    scratch_shapes = [
        pltpu.VMEM((D_CONV - 1 + l, BD_INNER), jnp.float32),      # zero-padded conv input
        pltpu.VMEM((l, D_STATE, BD_INNER), jnp.float32),          # hoisted dA
        pltpu.VMEM((l, D_STATE, BD_INNER), jnp.float32),          # hoisted dB*u
        pltpu.VMEM((l, D_STATE, BD_INNER), jnp.float32),          # hoisted broadcast C
        pltpu.VMEM((l, BD_INNER), jnp.float32),                   # per-step y rows
    ]

    out_f = pl.pallas_call(
        residual_block_kernel,
        out_shape=jax.ShapeDtypeStruct((l, b * d), jnp.float32),
        grid=(1,),                                                # single invocation (batch folded)
        in_specs=in_specs,
        out_specs=pl.BlockSpec((l, b * d), lambda i: (0, 0)),
        scratch_shapes=scratch_shapes,
    )(x_f, *kparams)

    # unfold batch from lanes back to (B, L, D_MODEL)
    return out_f.reshape(l, b, d).transpose(1, 0, 2)


def init_params(key):
    """Deterministic synthetic parameters (shapes match MambaBlock/RMSNorm __init__)."""
    ks = jax.random.split(key, 7)

    def unif(k, shape, fan_in):
        bound = 1.0 / np.sqrt(fan_in)
        return jax.random.uniform(k, shape, jnp.float32, -bound, bound)

    w_in_T = unif(ks[0], (D_MODEL, 2 * D_INNER), D_MODEL)        # in_proj (no bias)
    conv_w = unif(ks[1], (D_CONV, D_INNER), D_CONV)              # depthwise conv weight
    conv_b = unif(ks[2], (1, D_INNER), D_CONV)                   # conv bias
    w_xp_T = unif(ks[3], (D_INNER, DT_RANK + 2 * D_STATE), D_INNER)   # x_proj
    w_dt_T = unif(ks[4], (DT_RANK, D_INNER), DT_RANK)            # dt_proj weight
    b_dt = unif(ks[5], (1, D_INNER), DT_RANK)                    # dt_proj bias
    a_log = jnp.log(jnp.broadcast_to(
        jnp.arange(1, D_STATE + 1, dtype=jnp.float32)[None, :],
        (D_INNER, D_STATE))) + 0.0                               # A_log param
    D_param = jnp.ones((1, D_INNER), jnp.float32)                # D param
    w_out_T = unif(ks[6], (D_INNER, D_MODEL), D_INNER)           # out_proj (no bias)
    rms_w = jnp.ones((1, D_MODEL), jnp.float32)                  # RMSNorm weight
    return (w_in_T, conv_w, conv_b, w_xp_T, w_dt_T, b_dt,
            a_log, D_param, w_out_T, rms_w)


def ref_forward(x, params):
    """Pure-JAX reference mirroring the PyTorch forward exactly."""
    (w_in_T, conv_w, conv_b, w_xp_T, w_dt_T, b_dt,
     a_log, D_param, w_out_T, rms_w) = params
    b, l, d = x.shape
    with jax.default_matmul_precision("highest"):
        xr = x @ w_in_T
        xi, res = xr[..., :D_INNER], xr[..., D_INNER:]
        if not REMOVE_CONV:
            xi_pad = jnp.pad(xi, ((0, 0), (D_CONV - 1, 0), (0, 0)))
            conv = jnp.zeros_like(xi) + conv_b
            for k in range(D_CONV):
                conv = conv + xi_pad[:, k:k + l, :] * conv_w[k][None, None, :]
            xc = jax.nn.silu(conv)
        else:
            xc = xi
        A = -jnp.exp(a_log)
        x_dbl = xc @ w_xp_T
        delta_r = x_dbl[..., :DT_RANK]
        Bm = x_dbl[..., DT_RANK:DT_RANK + D_STATE]
        Cm = x_dbl[..., DT_RANK + D_STATE:]
        delta = jax.nn.softplus(delta_r @ w_dt_T + b_dt)
        deltaA = jnp.exp(delta[..., None] * A[None, None])
        dBu = delta[..., None] * Bm[:, :, None, :] * xc[..., None]
        h = jnp.zeros((b, D_INNER, D_STATE), jnp.float32)
        ys = []
        for i in range(l):
            h = deltaA[:, i] * h + dBu[:, i]
            ys.append(jnp.einsum('bdn,bn->bd', h, Cm[:, i]))
        y = jnp.stack(ys, axis=1) + xc * D_param
        if SKIP == "Gating":
            y = y * jax.nn.silu(res)
        elif SKIP == "Additive":
            y = y + SKIP_STRENGTH * xc
        out = y @ w_out_T + x
        ms = jnp.mean(out * out, axis=-1, keepdims=True)
        return out * jax.lax.rsqrt(ms + EPS) * rms_w


if __name__ == "__main__":
    key = jax.random.PRNGKey(0)
    pkey, xkey = jax.random.split(key)
    params = init_params(pkey)
    x = jax.random.normal(xkey, (BATCH, SEQ_LEN, D_MODEL), jnp.float32)

    out = residual_block(x, params)
    out = jax.block_until_ready(out)

    ref = ref_forward(x, params)
    np.testing.assert_allclose(np.asarray(out), np.asarray(ref),
                               rtol=1e-4, atol=1e-4)
    print("KERNEL_OK")
</pallas_src>

<mosaic_0001>
module attributes {stable_mosaic.version = 11 : i64} {
  func.func @residual_block_kernel(%arg0: i32, %arg1: memref<8x64xf32, #tpu.memory_space<vmem>>, %arg2: memref<64x128xf32, #tpu.memory_space<vmem>>, %arg3: memref<64x128xf32, #tpu.memory_space<vmem>>, %arg4: memref<4x128xf32, #tpu.memory_space<vmem>>, %arg5: memref<1x128xf32, #tpu.memory_space<vmem>>, %arg6: memref<128x128xf32, #tpu.memory_space<vmem>>, %arg7: memref<128x32xf32, #tpu.memory_space<vmem>>, %arg8: memref<128x32xf32, #tpu.memory_space<vmem>>, %arg9: memref<1x128xf32, #tpu.memory_space<vmem>>, %arg10: memref<16x128xf32, #tpu.memory_space<vmem>>, %arg11: memref<1x128xf32, #tpu.memory_space<vmem>>, %arg12: memref<128x64xf32, #tpu.memory_space<vmem>>, %arg13: memref<1x64xf32, #tpu.memory_space<vmem>>, %arg14: memref<64x64xf32, #tpu.memory_space<vmem>>, %arg15: memref<8x64xf32, #tpu.memory_space<vmem>>, %arg16: memref<11x128xf32, #tpu.memory_space<vmem>>, %arg17: memref<8x16x128xf32, #tpu.memory_space<vmem>>, %arg18: memref<8x16x128xf32, #tpu.memory_space<vmem>>, %arg19: memref<8x16x128xf32, #tpu.memory_space<vmem>>, %arg20: memref<8x128xf32, #tpu.memory_space<vmem>>) attributes {dimension_semantics = [#tpu.dimension_semantics<arbitrary>], iteration_bounds = array<i64: 1>, scalar_prefetch = 0 : i64, scratch_operands = 5 : i64, tpu.core_type = #tpu.core_type<tc>, window_params = [{pipeline_mode = #tpu.pipeline_mode<synchronous>, transform_indices = @transform_0, window_bounds = array<i64: 8, 64>}, {pipeline_mode = #tpu.pipeline_mode<synchronous>, transform_indices = @transform_1, window_bounds = array<i64: 64, 128>}, {pipeline_mode = #tpu.pipeline_mode<synchronous>, transform_indices = @transform_2, window_bounds = array<i64: 64, 128>}, {pipeline_mode = #tpu.pipeline_mode<synchronous>, transform_indices = @transform_3, window_bounds = array<i64: 4, 128>}, {pipeline_mode = #tpu.pipeline_mode<synchronous>, transform_indices = @transform_4, window_bounds = array<i64: 1, 128>}, {pipeline_mode = #tpu.pipeline_mode<synchronous>, transform_indices = @transform_5, window_bounds = array<i64: 128, 128>}, {pipeline_mode = #tpu.pipeline_mode<synchronous>, transform_indices = @transform_6, window_bounds = array<i64: 128, 32>}, {pipeline_mode = #tpu.pipeline_mode<synchronous>, transform_indices = @transform_7, window_bounds = array<i64: 128, 32>}, {pipeline_mode = #tpu.pipeline_mode<synchronous>, transform_indices = @transform_8, window_bounds = array<i64: 1, 128>}, {pipeline_mode = #tpu.pipeline_mode<synchronous>, transform_indices = @transform_9, window_bounds = array<i64: 16, 128>}, {pipeline_mode = #tpu.pipeline_mode<synchronous>, transform_indices = @transform_10, window_bounds = array<i64: 1, 128>}, {pipeline_mode = #tpu.pipeline_mode<synchronous>, transform_indices = @transform_11, window_bounds = array<i64: 128, 64>}, {pipeline_mode = #tpu.pipeline_mode<synchronous>, transform_indices = @transform_12, window_bounds = array<i64: 1, 64>}, {pipeline_mode = #tpu.pipeline_mode<synchronous>, transform_indices = @transform_13, window_bounds = array<i64: 64, 64>}, {pipeline_mode = #tpu.pipeline_mode<synchronous>, transform_indices = @transform_14, window_bounds = array<i64: 8, 64>}]} {
    %c0 = arith.constant 0 : index
    %c0_0 = arith.constant 0 : index
    %0 = vector.load %arg1[%c0, %c0_0] : memref<8x64xf32, #tpu.memory_space<vmem>>, vector<8x64xf32>
    %c0_1 = arith.constant 0 : index
    %c0_2 = arith.constant 0 : index
    %1 = vector.load %arg2[%c0_1, %c0_2] : memref<64x128xf32, #tpu.memory_space<vmem>>, vector<64x128xf32>
    %cst = arith.constant dense<0.000000e+00> : vector<8x128xf32>
    %2 = tpu.matmul %0, %1, %cst {dimension_numbers = #tpu.dot_dimension_numbers<[1], [0], [0], [1], [0, 0, 1, 1], [], []>} : vector<8x64xf32>, vector<64x128xf32>, vector<8x128xf32> -> vector<8x128xf32>
    %c0_3 = arith.constant 0 : index
    %c0_4 = arith.constant 0 : index
    %3 = vector.load %arg3[%c0_3, %c0_4] : memref<64x128xf32, #tpu.memory_space<vmem>>, vector<64x128xf32>
    %cst_5 = arith.constant dense<0.000000e+00> : vector<8x128xf32>
    %4 = tpu.matmul %0, %3, %cst_5 {dimension_numbers = #tpu.dot_dimension_numbers<[1], [0], [0], [1], [0, 0, 1, 1], [], []>} : vector<8x64xf32>, vector<64x128xf32>, vector<8x128xf32> -> vector<8x128xf32>
    %cst_6 = arith.constant 0.000000e+00 : f32
    %5 = vector.broadcast %cst_6 : f32 to vector<3x128xf32>
    %c0_7 = arith.constant 0 : index
    %c0_8 = arith.constant 0 : index
    %6 = vector.load %arg16[%c0_7, %c0_8] : memref<11x128xf32, #tpu.memory_space<vmem>>, vector<3x128xf32>
    tpu.vector_store %arg16[%c0_7, %c0_8], %5 {strides = array<i32>} : memref<11x128xf32, #tpu.memory_space<vmem>>, vector<3x128xf32>,
    %c3 = arith.constant 3 : index
    %c0_9 = arith.constant 0 : index
    %7 = vector.load %arg16[%c3, %c0_9] : memref<11x128xf32, #tpu.memory_space<vmem>>, vector<8x128xf32>
    tpu.vector_store %arg16[%c3, %c0_9], %2 {strides = array<i32>} : memref<11x128xf32, #tpu.memory_space<vmem>>, vector<8x128xf32>,
    %cst_10 = arith.constant 0.000000e+00 : f32
    %8 = vector.broadcast %cst_10 : f32 to vector<8x128xf32>
    %c0_11 = arith.constant 0 : index
    %c0_12 = arith.constant 0 : index
    %9 = vector.load %arg5[%c0_11, %c0_12] : memref<1x128xf32, #tpu.memory_space<vmem>>, vector<1x128xf32>
    %10 = vector.broadcast %9 : vector<1x128xf32> to vector<8x128xf32>
    %11 = arith.addf %8, %10 : vector<8x128xf32>
    %c0_13 = arith.constant 0 : index
    %c0_14 = arith.constant 0 : index
    %12 = vector.load %arg16[%c0_13, %c0_14] : memref<11x128xf32, #tpu.memory_space<vmem>>, vector<8x128xf32>
    %c0_15 = arith.constant 0 : index
    %c0_16 = arith.constant 0 : index
    %13 = vector.load %arg4[%c0_15, %c0_16] : memref<4x128xf32, #tpu.memory_space<vmem>>, vector<1x128xf32>
    %14 = vector.broadcast %13 : vector<1x128xf32> to vector<8x128xf32>
    %15 = arith.mulf %12, %14 : vector<8x128xf32>
    %16 = arith.addf %11, %15 : vector<8x128xf32>
    %c1 = arith.constant 1 : index
    %c0_17 = arith.constant 0 : index
    %17 = vector.load %arg16[%c1, %c0_17] : memref<11x128xf32, #tpu.memory_space<vmem>>, vector<8x128xf32>
    %c1_18 = arith.constant 1 : index
    %c0_19 = arith.constant 0 : index
    %18 = vector.load %arg4[%c1_18, %c0_19] : memref<4x128xf32, #tpu.memory_space<vmem>>, vector<1x128xf32>
    %19 = vector.broadcast %18 : vector<1x128xf32> to vector<8x128xf32>
    %20 = arith.mulf %17, %19 : vector<8x128xf32>
    %21 = arith.addf %16, %20 : vector<8x128xf32>
    %c2 = arith.constant 2 : index
    %c0_20 = arith.constant 0 : index
    %22 = vector.load %arg16[%c2, %c0_20] : memref<11x128xf32, #tpu.memory_space<vmem>>, vector<8x128xf32>
    %c2_21 = arith.constant 2 : index
    %c0_22 = arith.constant 0 : index
    %23 = vector.load %arg4[%c2_21, %c0_22] : memref<4x128xf32, #tpu.memory_space<vmem>>, vector<1x128xf32>
    %24 = vector.broadcast %23 : vector<1x128xf32> to vector<8x128xf32>
    %25 = arith.mulf %22, %24 : vector<8x128xf32>
    %26 = arith.addf %21, %25 : vector<8x128xf32>
    %c3_23 = arith.constant 3 : index
    %c0_24 = arith.constant 0 : index
    %27 = vector.load %arg16[%c3_23, %c0_24] : memref<11x128xf32, #tpu.memory_space<vmem>>, vector<8x128xf32>
    %c3_25 = arith.constant 3 : index
    %c0_26 = arith.constant 0 : index
    %28 = vector.load %arg4[%c3_25, %c0_26] : memref<4x128xf32, #tpu.memory_space<vmem>>, vector<1x128xf32>
    %29 = vector.broadcast %28 : vector<1x128xf32> to vector<8x128xf32>
    %30 = arith.mulf %27, %29 : vector<8x128xf32>
    %31 = arith.addf %26, %30 : vector<8x128xf32>
    %32 = arith.negf %31 : vector<8x128xf32>
    %33 = math.exp %32 : vector<8x128xf32>
    %cst_27 = arith.constant 1.000000e+00 : f32
    %34 = vector.broadcast %cst_27 : f32 to vector<8x128xf32>
    %35 = arith.addf %34, %33 : vector<8x128xf32>
    %36 = arith.divf %34, %35 : vector<8x128xf32>
    %37 = arith.mulf %31, %36 : vector<8x128xf32>
    %c0_28 = arith.constant 0 : index
    %c0_29 = arith.constant 0 : index
    %38 = vector.load %arg6[%c0_28, %c0_29] : memref<128x128xf32, #tpu.memory_space<vmem>>, vector<128x128xf32>
    %cst_30 = arith.constant dense<0.000000e+00> : vector<8x128xf32>
    %39 = tpu.matmul %37, %38, %cst_30 {dimension_numbers = #tpu.dot_dimension_numbers<[1], [0], [0], [1], [0, 0, 1, 1], [], []>} : vector<8x128xf32>, vector<128x128xf32>, vector<8x128xf32> -> vector<8x128xf32>
    %c0_31 = arith.constant 0 : index
    %c0_32 = arith.constant 0 : index
    %40 = vector.load %arg9[%c0_31, %c0_32] : memref<1x128xf32, #tpu.memory_space<vmem>>, vector<1x128xf32>
    %41 = vector.broadcast %40 : vector<1x128xf32> to vector<8x128xf32>
    %42 = arith.addf %39, %41 : vector<8x128xf32>
    %cst_33 = arith.constant 0.000000e+00 : f32
    %43 = vector.broadcast %cst_33 : f32 to vector<8x128xf32>
    %44 = arith.maximumf %42, %43 : vector<8x128xf32>
    %45 = vector.broadcast %cst_33 : f32 to vector<8x128xf32>
    %46 = arith.subf %42, %45 : vector<8x128xf32>
    %47 = arith.cmpf one, %46, %46 : vector<8x128xf32>
    %48 = vector.broadcast %cst_33 : f32 to vector<8x128xf32>
    %49 = arith.addf %42, %48 : vector<8x128xf32>
    %50 = math.absf %46 : vector<8x128xf32>
    %cst_34 = arith.constant 0.000000e+00 : f32
    %51 = vector.broadcast %cst_34 : f32 to vector<8x128xf32>
    %52 = arith.subf %51, %50 : vector<8x128xf32>
    %53 = math.exp %52 : vector<8x128xf32>
    %54 = math.log1p %53 : vector<8x128xf32>
    %55 = arith.addf %44, %54 : vector<8x128xf32>
    %56 = arith.select %47, %49, %55 : vector<8x128xi1>, vector<8x128xf32>
    %c0_35 = arith.constant 0 : index
    %c0_36 = arith.constant 0 : index
    %57 = vector.load %arg7[%c0_35, %c0_36] : memref<128x32xf32, #tpu.memory_space<vmem>>, vector<128x32xf32>
    %cst_37 = arith.constant dense<0.000000e+00> : vector<8x32xf32>
    %58 = tpu.matmul %37, %57, %cst_37 {dimension_numbers = #tpu.dot_dimension_numbers<[1], [0], [0], [1], [0, 0, 1, 1], [], []>} : vector<8x128xf32>, vector<128x32xf32>, vector<8x32xf32> -> vector<8x32xf32>
    %c0_38 = arith.constant 0 : index
    %c0_39 = arith.constant 0 : index
    %59 = vector.load %arg8[%c0_38, %c0_39] : memref<128x32xf32, #tpu.memory_space<vmem>>, vector<128x32xf32>
    %cst_40 = arith.constant dense<0.000000e+00> : vector<8x32xf32>
    %60 = tpu.matmul %37, %59, %cst_40 {dimension_numbers = #tpu.dot_dimension_numbers<[1], [0], [0], [1], [0, 0, 1, 1], [], []>} : vector<8x128xf32>, vector<128x32xf32>, vector<8x32xf32> -> vector<8x32xf32>
    %61 = arith.mulf %56, %37 : vector<8x128xf32>
    %c0_41 = arith.constant 0 : index
    %c0_42 = arith.constant 0 : index
    %62 = vector.load %arg10[%c0_41, %c0_42] : memref<16x128xf32, #tpu.memory_space<vmem>>, vector<16x128xf32>
    %63 = vector.extract_strided_slice %58 {offsets = [0, 0], sizes = [8, 16], strides = [1, 1]} : vector<8x32xf32> to vector<8x16xf32>
    %64 = tpu.transpose %63, [1, 0] : vector<8x16xf32> -> vector<16x8xf32>
    %65 = vector.extract_strided_slice %58 {offsets = [0, 16], sizes = [8, 16], strides = [1, 1]} : vector<8x32xf32> to vector<8x16xf32>
    %66 = tpu.transpose %65, [1, 0] : vector<8x16xf32> -> vector<16x8xf32>
    %67 = vector.extract_strided_slice %60 {offsets = [0, 0], sizes = [8, 16], strides = [1, 1]} : vector<8x32xf32> to vector<8x16xf32>
    %68 = tpu.transpose %67, [1, 0] : vector<8x16xf32> -> vector<16x8xf32>
    %69 = vector.extract_strided_slice %60 {offsets = [0, 16], sizes = [8, 16], strides = [1, 1]} : vector<8x32xf32> to vector<8x16xf32>
    %70 = tpu.transpose %69, [1, 0] : vector<8x16xf32> -> vector<16x8xf32>
    %71 = vector.extract_strided_slice %56 {offsets = [0, 0], sizes = [1, 128], strides = [1, 1]} : vector<8x128xf32> to vector<1x128xf32>
    %72 = vector.broadcast %71 : vector<1x128xf32> to vector<16x128xf32>
    %73 = arith.mulf %72, %62 : vector<16x128xf32>
    %74 = math.exp %73 : vector<16x128xf32>
    %c0_43 = arith.constant 0 : index
    %c0_44 = arith.constant 0 : index
    %c0_45 = arith.constant 0 : index
    %75 = vector.load %arg17[%c0_43, %c0_44, %c0_45] : memref<8x16x128xf32, #tpu.memory_space<vmem>>, vector<1x16x128xf32>
    %76 = vector.shape_cast %75 : vector<1x16x128xf32> to vector<16x128xf32>
    %77 = vector.shape_cast %74 : vector<16x128xf32> to vector<1x16x128xf32>
    tpu.vector_store %arg17[%c0_43, %c0_44, %c0_45], %77 {strides = array<i32>} : memref<8x16x128xf32, #tpu.memory_space<vmem>>, vector<1x16x128xf32>,
    %78 = vector.extract_strided_slice %64 {offsets = [0, 0], sizes = [16, 1], strides = [1, 1]} : vector<16x8xf32> to vector<16x1xf32>
    %79 = vector.shape_cast %78 : vector<16x1xf32> to vector<16x1xf32>
    %80 = vector.broadcast %79 : vector<16x1xf32> to vector<16x64xf32>
    %81 = vector.extract_strided_slice %66 {offsets = [0, 0], sizes = [16, 1], strides = [1, 1]} : vector<16x8xf32> to vector<16x1xf32>
    %82 = vector.shape_cast %81 : vector<16x1xf32> to vector<16x1xf32>
    %83 = vector.broadcast %82 : vector<16x1xf32> to vector<16x64xf32>
    %84 = tpu.concatenate %80, %83 in 1 : vector<16x64xf32>, vector<16x64xf32> -> vector<16x128xf32>
    %85 = vector.extract_strided_slice %68 {offsets = [0, 0], sizes = [16, 1], strides = [1, 1]} : vector<16x8xf32> to vector<16x1xf32>
    %86 = vector.shape_cast %85 : vector<16x1xf32> to vector<16x1xf32>
    %87 = vector.broadcast %86 : vector<16x1xf32> to vector<16x64xf32>
    %88 = vector.extract_strided_slice %70 {offsets = [0, 0], sizes = [16, 1], strides = [1, 1]} : vector<16x8xf32> to vector<16x1xf32>
    %89 = vector.shape_cast %88 : vector<16x1xf32> to vector<16x1xf32>
    %90 = vector.broadcast %89 : vector<16x1xf32> to vector<16x64xf32>
    %91 = tpu.concatenate %87, %90 in 1 : vector<16x64xf32>, vector<16x64xf32> -> vector<16x128xf32>
    %c0_46 = arith.constant 0 : index
    %c0_47 = arith.constant 0 : index
    %c0_48 = arith.constant 0 : index
    %92 = vector.load %arg19[%c0_46, %c0_47, %c0_48] : memref<8x16x128xf32, #tpu.memory_space<vmem>>, vector<1x16x128xf32>
    %93 = vector.shape_cast %92 : vector<1x16x128xf32> to vector<16x128xf32>
    %94 = vector.shape_cast %91 : vector<16x128xf32> to vector<1x16x128xf32>
    tpu.vector_store %arg19[%c0_46, %c0_47, %c0_48], %94 {strides = array<i32>} : memref<8x16x128xf32, #tpu.memory_space<vmem>>, vector<1x16x128xf32>,
    %95 = vector.extract_strided_slice %61 {offsets = [0, 0], sizes = [1, 128], strides = [1, 1]} : vector<8x128xf32> to vector<1x128xf32>
    %96 = vector.broadcast %95 : vector<1x128xf32> to vector<16x128xf32>
    %97 = arith.mulf %96, %84 : vector<16x128xf32>
    %c0_49 = arith.constant 0 : index
    %c0_50 = arith.constant 0 : index
    %c0_51 = arith.constant 0 : index
    %98 = vector.load %arg18[%c0_49, %c0_50, %c0_51] : memref<8x16x128xf32, #tpu.memory_space<vmem>>, vector<1x16x128xf32>
    %99 = vector.shape_cast %98 : vector<1x16x128xf32> to vector<16x128xf32>
    %100 = vector.shape_cast %97 : vector<16x128xf32> to vector<1x16x128xf32>
    tpu.vector_store %arg18[%c0_49, %c0_50, %c0_51], %100 {strides = array<i32>} : memref<8x16x128xf32, #tpu.memory_space<vmem>>, vector<1x16x128xf32>,
    %101 = vector.extract_strided_slice %56 {offsets = [1, 0], sizes = [1, 128], strides = [1, 1]} : vector<8x128xf32> to vector<1x128xf32>
    %102 = vector.broadcast %101 : vector<1x128xf32> to vector<16x128xf32>
    %103 = arith.mulf %102, %62 : vector<16x128xf32>
    %104 = math.exp %103 : vector<16x128xf32>
    %c1_52 = arith.constant 1 : index
    %c0_53 = arith.constant 0 : index
    %c0_54 = arith.constant 0 : index
    %105 = vector.load %arg17[%c1_52, %c0_53, %c0_54] : memref<8x16x128xf32, #tpu.memory_space<vmem>>, vector<1x16x128xf32>
    %106 = vector.shape_cast %105 : vector<1x16x128xf32> to vector<16x128xf32>
    %107 = vector.shape_cast %104 : vector<16x128xf32> to vector<1x16x128xf32>
    tpu.vector_store %arg17[%c1_52, %c0_53, %c0_54], %107 {strides = array<i32>} : memref<8x16x128xf32, #tpu.memory_space<vmem>>, vector<1x16x128xf32>,
    %108 = vector.extract_strided_slice %64 {offsets = [0, 1], sizes = [16, 1], strides = [1, 1]} : vector<16x8xf32> to vector<16x1xf32>
    %109 = vector.shape_cast %108 : vector<16x1xf32> to vector<16x1xf32>
    %110 = vector.broadcast %109 : vector<16x1xf32> to vector<16x64xf32>
    %111 = vector.extract_strided_slice %66 {offsets = [0, 1], sizes = [16, 1], strides = [1, 1]} : vector<16x8xf32> to vector<16x1xf32>
    %112 = vector.shape_cast %111 : vector<16x1xf32> to vector<16x1xf32>
    %113 = vector.broadcast %112 : vector<16x1xf32> to vector<16x64xf32>
    %114 = tpu.concatenate %110, %113 in 1 : vector<16x64xf32>, vector<16x64xf32> -> vector<16x128xf32>
    %115 = vector.extract_strided_slice %68 {offsets = [0, 1], sizes = [16, 1], strides = [1, 1]} : vector<16x8xf32> to vector<16x1xf32>
    %116 = vector.shape_cast %115 : vector<16x1xf32> to vector<16x1xf32>
    %117 = vector.broadcast %116 : vector<16x1xf32> to vector<16x64xf32>
    %118 = vector.extract_strided_slice %70 {offsets = [0, 1], sizes = [16, 1], strides = [1, 1]} : vector<16x8xf32> to vector<16x1xf32>
    %119 = vector.shape_cast %118 : vector<16x1xf32> to vector<16x1xf32>
    %120 = vector.broadcast %119 : vector<16x1xf32> to vector<16x64xf32>
    %121 = tpu.concatenate %117, %120 in 1 : vector<16x64xf32>, vector<16x64xf32> -> vector<16x128xf32>
    %c1_55 = arith.constant 1 : index
    %c0_56 = arith.constant 0 : index
    %c0_57 = arith.constant 0 : index
    %122 = vector.load %arg19[%c1_55, %c0_56, %c0_57] : memref<8x16x128xf32, #tpu.memory_space<vmem>>, vector<1x16x128xf32>
    %123 = vector.shape_cast %122 : vector<1x16x128xf32> to vector<16x128xf32>
    %124 = vector.shape_cast %121 : vector<16x128xf32> to vector<1x16x128xf32>
    tpu.vector_store %arg19[%c1_55, %c0_56, %c0_57], %124 {strides = array<i32>} : memref<8x16x128xf32, #tpu.memory_space<vmem>>, vector<1x16x128xf32>,
    %125 = vector.extract_strided_slice %61 {offsets = [1, 0], sizes = [1, 128], strides = [1, 1]} : vector<8x128xf32> to vector<1x128xf32>
    %126 = vector.broadcast %125 : vector<1x128xf32> to vector<16x128xf32>
    %127 = arith.mulf %126, %114 : vector<16x128xf32>
    %c1_58 = arith.constant 1 : index
    %c0_59 = arith.constant 0 : index
    %c0_60 = arith.constant 0 : index
    %128 = vector.load %arg18[%c1_58, %c0_59, %c0_60] : memref<8x16x128xf32, #tpu.memory_space<vmem>>, vector<1x16x128xf32>
    %129 = vector.shape_cast %128 : vector<1x16x128xf32> to vector<16x128xf32>
    %130 = vector.shape_cast %127 : vector<16x128xf32> to vector<1x16x128xf32>
    tpu.vector_store %arg18[%c1_58, %c0_59, %c0_60], %130 {strides = array<i32>} : memref<8x16x128xf32, #tpu.memory_space<vmem>>, vector<1x16x128xf32>,
    %131 = vector.extract_strided_slice %56 {offsets = [2, 0], sizes = [1, 128], strides = [1, 1]} : vector<8x128xf32> to vector<1x128xf32>
    %132 = vector.broadcast %131 : vector<1x128xf32> to vector<16x128xf32>
    %133 = arith.mulf %132, %62 : vector<16x128xf32>
    %134 = math.exp %133 : vector<16x128xf32>
    %c2_61 = arith.constant 2 : index
    %c0_62 = arith.constant 0 : index
    %c0_63 = arith.constant 0 : index
    %135 = vector.load %arg17[%c2_61, %c0_62, %c0_63] : memref<8x16x128xf32, #tpu.memory_space<vmem>>, vector<1x16x128xf32>
    %136 = vector.shape_cast %135 : vector<1x16x128xf32> to vector<16x128xf32>
    %137 = vector.shape_cast %134 : vector<16x128xf32> to vector<1x16x128xf32>
    tpu.vector_store %arg17[%c2_61, %c0_62, %c0_63], %137 {strides = array<i32>} : memref<8x16x128xf32, #tpu.memory_space<vmem>>, vector<1x16x128xf32>,
    %138 = vector.extract_strided_slice %64 {offsets = [0, 2], sizes = [16, 1], strides = [1, 1]} : vector<16x8xf32> to vector<16x1xf32>
    %139 = vector.shape_cast %138 : vector<16x1xf32> to vector<16x1xf32>
    %140 = vector.broadcast %139 : vector<16x1xf32> to vector<16x64xf32>
    %141 = vector.extract_strided_slice %66 {offsets = [0, 2], sizes = [16, 1], strides = [1, 1]} : vector<16x8xf32> to vector<16x1xf32>
    %142 = vector.shape_cast %141 : vector<16x1xf32> to vector<16x1xf32>
    %143 = vector.broadcast %142 : vector<16x1xf32> to vector<16x64xf32>
    %144 = tpu.concatenate %140, %143 in 1 : vector<16x64xf32>, vector<16x64xf32> -> vector<16x128xf32>
    %145 = vector.extract_strided_slice %68 {offsets = [0, 2], sizes = [16, 1], strides = [1, 1]} : vector<16x8xf32> to vector<16x1xf32>
    %146 = vector.shape_cast %145 : vector<16x1xf32> to vector<16x1xf32>
    %147 = vector.broadcast %146 : vector<16x1xf32> to vector<16x64xf32>
    %148 = vector.extract_strided_slice %70 {offsets = [0, 2], sizes = [16, 1], strides = [1, 1]} : vector<16x8xf32> to vector<16x1xf32>
    %149 = vector.shape_cast %148 : vector<16x1xf32> to vector<16x1xf32>
    %150 = vector.broadcast %149 : vector<16x1xf32> to vector<16x64xf32>
    %151 = tpu.concatenate %147, %150 in 1 : vector<16x64xf32>, vector<16x64xf32> -> vector<16x128xf32>
    %c2_64 = arith.constant 2 : index
    %c0_65 = arith.constant 0 : index
    %c0_66 = arith.constant 0 : index
    %152 = vector.load %arg19[%c2_64, %c0_65, %c0_66] : memref<8x16x128xf32, #tpu.memory_space<vmem>>, vector<1x16x128xf32>
    %153 = vector.shape_cast %152 : vector<1x16x128xf32> to vector<16x128xf32>
    %154 = vector.shape_cast %151 : vector<16x128xf32> to vector<1x16x128xf32>
    tpu.vector_store %arg19[%c2_64, %c0_65, %c0_66], %154 {strides = array<i32>} : memref<8x16x128xf32, #tpu.memory_space<vmem>>, vector<1x16x128xf32>,
    %155 = vector.extract_strided_slice %61 {offsets = [2, 0], sizes = [1, 128], strides = [1, 1]} : vector<8x128xf32> to vector<1x128xf32>
    %156 = vector.broadcast %155 : vector<1x128xf32> to vector<16x128xf32>
    %157 = arith.mulf %156, %144 : vector<16x128xf32>
    %c2_67 = arith.constant 2 : index
    %c0_68 = arith.constant 0 : index
    %c0_69 = arith.constant 0 : index
    %158 = vector.load %arg18[%c2_67, %c0_68, %c0_69] : memref<8x16x128xf32, #tpu.memory_space<vmem>>, vector<1x16x128xf32>
    %159 = vector.shape_cast %158 : vector<1x16x128xf32> to vector<16x128xf32>
    %160 = vector.shape_cast %157 : vector<16x128xf32> to vector<1x16x128xf32>
    tpu.vector_store %arg18[%c2_67, %c0_68, %c0_69], %160 {strides = array<i32>} : memref<8x16x128xf32, #tpu.memory_space<vmem>>, vector<1x16x128xf32>,
    %161 = vector.extract_strided_slice %56 {offsets = [3, 0], sizes = [1, 128], strides = [1, 1]} : vector<8x128xf32> to vector<1x128xf32>
    %162 = vector.broadcast %161 : vector<1x128xf32> to vector<16x128xf32>
    %163 = arith.mulf %162, %62 : vector<16x128xf32>
    %164 = math.exp %163 : vector<16x128xf32>
    %c3_70 = arith.constant 3 : index
    %c0_71 = arith.constant 0 : index
    %c0_72 = arith.constant 0 : index
    %165 = vector.load %arg17[%c3_70, %c0_71, %c0_72] : memref<8x16x128xf32, #tpu.memory_space<vmem>>, vector<1x16x128xf32>
    %166 = vector.shape_cast %165 : vector<1x16x128xf32> to vector<16x128xf32>
    %167 = vector.shape_cast %164 : vector<16x128xf32> to vector<1x16x128xf32>
    tpu.vector_store %arg17[%c3_70, %c0_71, %c0_72], %167 {strides = array<i32>} : memref<8x16x128xf32, #tpu.memory_space<vmem>>, vector<1x16x128xf32>,
    %168 = vector.extract_strided_slice %64 {offsets = [0, 3], sizes = [16, 1], strides = [1, 1]} : vector<16x8xf32> to vector<16x1xf32>
    %169 = vector.shape_cast %168 : vector<16x1xf32> to vector<16x1xf32>
    %170 = vector.broadcast %169 : vector<16x1xf32> to vector<16x64xf32>
    %171 = vector.extract_strided_slice %66 {offsets = [0, 3], sizes = [16, 1], strides = [1, 1]} : vector<16x8xf32> to vector<16x1xf32>
    %172 = vector.shape_cast %171 : vector<16x1xf32> to vector<16x1xf32>
    %173 = vector.broadcast %172 : vector<16x1xf32> to vector<16x64xf32>
    %174 = tpu.concatenate %170, %173 in 1 : vector<16x64xf32>, vector<16x64xf32> -> vector<16x128xf32>
    %175 = vector.extract_strided_slice %68 {offsets = [0, 3], sizes = [16, 1], strides = [1, 1]} : vector<16x8xf32> to vector<16x1xf32>
    %176 = vector.shape_cast %175 : vector<16x1xf32> to vector<16x1xf32>
    %177 = vector.broadcast %176 : vector<16x1xf32> to vector<16x64xf32>
    %178 = vector.extract_strided_slice %70 {offsets = [0, 3], sizes = [16, 1], strides = [1, 1]} : vector<16x8xf32> to vector<16x1xf32>
    %179 = vector.shape_cast %178 : vector<16x1xf32> to vector<16x1xf32>
    %180 = vector.broadcast %179 : vector<16x1xf32> to vector<16x64xf32>
    %181 = tpu.concatenate %177, %180 in 1 : vector<16x64xf32>, vector<16x64xf32> -> vector<16x128xf32>
    %c3_73 = arith.constant 3 : index
    %c0_74 = arith.constant 0 : index
    %c0_75 = arith.constant 0 : index
    %182 = vector.load %arg19[%c3_73, %c0_74, %c0_75] : memref<8x16x128xf32, #tpu.memory_space<vmem>>, vector<1x16x128xf32>
    %183 = vector.shape_cast %182 : vector<1x16x128xf32> to vector<16x128xf32>
    %184 = vector.shape_cast %181 : vector<16x128xf32> to vector<1x16x128xf32>
    tpu.vector_store %arg19[%c3_73, %c0_74, %c0_75], %184 {strides = array<i32>} : memref<8x16x128xf32, #tpu.memory_space<vmem>>, vector<1x16x128xf32>,
    %185 = vector.extract_strided_slice %61 {offsets = [3, 0], sizes = [1, 128], strides = [1, 1]} : vector<8x128xf32> to vector<1x128xf32>
    %186 = vector.broadcast %185 : vector<1x128xf32> to vector<16x128xf32>
    %187 = arith.mulf %186, %174 : vector<16x128xf32>
    %c3_76 = arith.constant 3 : index
    %c0_77 = arith.constant 0 : index
    %c0_78 = arith.constant 0 : index
    %188 = vector.load %arg18[%c3_76, %c0_77, %c0_78] : memref<8x16x128xf32, #tpu.memory_space<vmem>>, vector<1x16x128xf32>
    %189 = vector.shape_cast %188 : vector<1x16x128xf32> to vector<16x128xf32>
    %190 = vector.shape_cast %187 : vector<16x128xf32> to vector<1x16x128xf32>
    tpu.vector_store %arg18[%c3_76, %c0_77, %c0_78], %190 {strides = array<i32>} : memref<8x16x128xf32, #tpu.memory_space<vmem>>, vector<1x16x128xf32>,
    %191 = vector.extract_strided_slice %56 {offsets = [4, 0], sizes = [1, 128], strides = [1, 1]} : vector<8x128xf32> to vector<1x128xf32>
    %192 = vector.broadcast %191 : vector<1x128xf32> to vector<16x128xf32>
    %193 = arith.mulf %192, %62 : vector<16x128xf32>
    %194 = math.exp %193 : vector<16x128xf32>
    %c4 = arith.constant 4 : index
    %c0_79 = arith.constant 0 : index
    %c0_80 = arith.constant 0 : index
    %195 = vector.load %arg17[%c4, %c0_79, %c0_80] : memref<8x16x128xf32, #tpu.memory_space<vmem>>, vector<1x16x128xf32>
    %196 = vector.shape_cast %195 : vector<1x16x128xf32> to vector<16x128xf32>
    %197 = vector.shape_cast %194 : vector<16x128xf32> to vector<1x16x128xf32>
    tpu.vector_store %arg17[%c4, %c0_79, %c0_80], %197 {strides = array<i32>} : memref<8x16x128xf32, #tpu.memory_space<vmem>>, vector<1x16x128xf32>,
    %198 = vector.extract_strided_slice %64 {offsets = [0, 4], sizes = [16, 1], strides = [1, 1]} : vector<16x8xf32> to vector<16x1xf32>
    %199 = vector.shape_cast %198 : vector<16x1xf32> to vector<16x1xf32>
    %200 = vector.broadcast %199 : vector<16x1xf32> to vector<16x64xf32>
    %201 = vector.extract_strided_slice %66 {offsets = [0, 4], sizes = [16, 1], strides = [1, 1]} : vector<16x8xf32> to vector<16x1xf32>
    %202 = vector.shape_cast %201 : vector<16x1xf32> to vector<16x1xf32>
    %203 = vector.broadcast %202 : vector<16x1xf32> to vector<16x64xf32>
    %204 = tpu.concatenate %200, %203 in 1 : vector<16x64xf32>, vector<16x64xf32> -> vector<16x128xf32>
    %205 = vector.extract_strided_slice %68 {offsets = [0, 4], sizes = [16, 1], strides = [1, 1]} : vector<16x8xf32> to vector<16x1xf32>
    %206 = vector.shape_cast %205 : vector<16x1xf32> to vector<16x1xf32>
    %207 = vector.broadcast %206 : vector<16x1xf32> to vector<16x64xf32>
    %208 = vector.extract_strided_slice %70 {offsets = [0, 4], sizes = [16, 1], strides = [1, 1]} : vector<16x8xf32> to vector<16x1xf32>
    %209 = vector.shape_cast %208 : vector<16x1xf32> to vector<16x1xf32>
    %210 = vector.broadcast %209 : vector<16x1xf32> to vector<16x64xf32>
    %211 = tpu.concatenate %207, %210 in 1 : vector<16x64xf32>, vector<16x64xf32> -> vector<16x128xf32>
    %c4_81 = arith.constant 4 : index
    %c0_82 = arith.constant 0 : index
    %c0_83 = arith.constant 0 : index
    %212 = vector.load %arg19[%c4_81, %c0_82, %c0_83] : memref<8x16x128xf32, #tpu.memory_space<vmem>>, vector<1x16x128xf32>
    %213 = vector.shape_cast %212 : vector<1x16x128xf32> to vector<16x128xf32>
    %214 = vector.shape_cast %211 : vector<16x128xf32> to vector<1x16x128xf32>
    tpu.vector_store %arg19[%c4_81, %c0_82, %c0_83], %214 {strides = array<i32>} : memref<8x16x128xf32, #tpu.memory_space<vmem>>, vector<1x16x128xf32>,
    %215 = vector.extract_strided_slice %61 {offsets = [4, 0], sizes = [1, 128], strides = [1, 1]} : vector<8x128xf32> to vector<1x128xf32>
    %216 = vector.broadcast %215 : vector<1x128xf32> to vector<16x128xf32>
    %217 = arith.mulf %216, %204 : vector<16x128xf32>
    %c4_84 = arith.constant 4 : index
    %c0_85 = arith.constant 0 : index
    %c0_86 = arith.constant 0 : index
    %218 = vector.load %arg18[%c4_84, %c0_85, %c0_86] : memref<8x16x128xf32, #tpu.memory_space<vmem>>, vector<1x16x128xf32>
    %219 = vector.shape_cast %218 : vector<1x16x128xf32> to vector<16x128xf32>
    %220 = vector.shape_cast %217 : vector<16x128xf32> to vector<1x16x128xf32>
    tpu.vector_store %arg18[%c4_84, %c0_85, %c0_86], %220 {strides = array<i32>} : memref<8x16x128xf32, #tpu.memory_space<vmem>>, vector<1x16x128xf32>,
    %221 = vector.extract_strided_slice %56 {offsets = [5, 0], sizes = [1, 128], strides = [1, 1]} : vector<8x128xf32> to vector<1x128xf32>
    %222 = vector.broadcast %221 : vector<1x128xf32> to vector<16x128xf32>
    %223 = arith.mulf %222, %62 : vector<16x128xf32>
    %224 = math.exp %223 : vector<16x128xf32>
    %c5 = arith.constant 5 : index
    %c0_87 = arith.constant 0 : index
    %c0_88 = arith.constant 0 : index
    %225 = vector.load %arg17[%c5, %c0_87, %c0_88] : memref<8x16x128xf32, #tpu.memory_space<vmem>>, vector<1x16x128xf32>
    %226 = vector.shape_cast %225 : vector<1x16x128xf32> to vector<16x128xf32>
    %227 = vector.shape_cast %224 : vector<16x128xf32> to vector<1x16x128xf32>
    tpu.vector_store %arg17[%c5, %c0_87, %c0_88], %227 {strides = array<i32>} : memref<8x16x128xf32, #tpu.memory_space<vmem>>, vector<1x16x128xf32>,
    %228 = vector.extract_strided_slice %64 {offsets = [0, 5], sizes = [16, 1], strides = [1, 1]} : vector<16x8xf32> to vector<16x1xf32>
    %229 = vector.shape_cast %228 : vector<16x1xf32> to vector<16x1xf32>
    %230 = vector.broadcast %229 : vector<16x1xf32> to vector<16x64xf32>
    %231 = vector.extract_strided_slice %66 {offsets = [0, 5], sizes = [16, 1], strides = [1, 1]} : vector<16x8xf32> to vector<16x1xf32>
    %232 = vector.shape_cast %231 : vector<16x1xf32> to vector<16x1xf32>
    %233 = vector.broadcast %232 : vector<16x1xf32> to vector<16x64xf32>
    %234 = tpu.concatenate %230, %233 in 1 : vector<16x64xf32>, vector<16x64xf32> -> vector<16x128xf32>
    %235 = vector.extract_strided_slice %68 {offsets = [0, 5], sizes = [16, 1], strides = [1, 1]} : vector<16x8xf32> to vector<16x1xf32>
    %236 = vector.shape_cast %235 : vector<16x1xf32> to vector<16x1xf32>
    %237 = vector.broadcast %236 : vector<16x1xf32> to vector<16x64xf32>
    %238 = vector.extract_strided_slice %70 {offsets = [0, 5], sizes = [16, 1], strides = [1, 1]} : vector<16x8xf32> to vector<16x1xf32>
    %239 = vector.shape_cast %238 : vector<16x1xf32> to vector<16x1xf32>
    %240 = vector.broadcast %239 : vector<16x1xf32> to vector<16x64xf32>
    %241 = tpu.concatenate %237, %240 in 1 : vector<16x64xf32>, vector<16x64xf32> -> vector<16x128xf32>
    %c5_89 = arith.constant 5 : index
    %c0_90 = arith.constant 0 : index
    %c0_91 = arith.constant 0 : index
    %242 = vector.load %arg19[%c5_89, %c0_90, %c0_91] : memref<8x16x128xf32, #tpu.memory_space<vmem>>, vector<1x16x128xf32>
    %243 = vector.shape_cast %242 : vector<1x16x128xf32> to vector<16x128xf32>
    %244 = vector.shape_cast %241 : vector<16x128xf32> to vector<1x16x128xf32>
    tpu.vector_store %arg19[%c5_89, %c0_90, %c0_91], %244 {strides = array<i32>} : memref<8x16x128xf32, #tpu.memory_space<vmem>>, vector<1x16x128xf32>,
    %245 = vector.extract_strided_slice %61 {offsets = [5, 0], sizes = [1, 128], strides = [1, 1]} : vector<8x128xf32> to vector<1x128xf32>
    %246 = vector.broadcast %245 : vector<1x128xf32> to vector<16x128xf32>
    %247 = arith.mulf %246, %234 : vector<16x128xf32>
    %c5_92 = arith.constant 5 : index
    %c0_93 = arith.constant 0 : index
    %c0_94 = arith.constant 0 : index
    %248 = vector.load %arg18[%c5_92, %c0_93, %c0_94] : memref<8x16x128xf32, #tpu.memory_space<vmem>>, vector<1x16x128xf32>
    %249 = vector.shape_cast %248 : vector<1x16x128xf32> to vector<16x128xf32>
    %250 = vector.shape_cast %247 : vector<16x128xf32> to vector<1x16x128xf32>
    tpu.vector_store %arg18[%c5_92, %c0_93, %c0_94], %250 {strides = array<i32>} : memref<8x16x128xf32, #tpu.memory_space<vmem>>, vector<1x16x128xf32>,
    %251 = vector.extract_strided_slice %56 {offsets = [6, 0], sizes = [1, 128], strides = [1, 1]} : vector<8x128xf32> to vector<1x128xf32>
    %252 = vector.broadcast %251 : vector<1x128xf32> to vector<16x128xf32>
    %253 = arith.mulf %252, %62 : vector<16x128xf32>
    %254 = math.exp %253 : vector<16x128xf32>
    %c6 = arith.constant 6 : index
    %c0_95 = arith.constant 0 : index
    %c0_96 = arith.constant 0 : index
    %255 = vector.load %arg17[%c6, %c0_95, %c0_96] : memref<8x16x128xf32, #tpu.memory_space<vmem>>, vector<1x16x128xf32>
    %256 = vector.shape_cast %255 : vector<1x16x128xf32> to vector<16x128xf32>
    %257 = vector.shape_cast %254 : vector<16x128xf32> to vector<1x16x128xf32>
    tpu.vector_store %arg17[%c6, %c0_95, %c0_96], %257 {strides = array<i32>} : memref<8x16x128xf32, #tpu.memory_space<vmem>>, vector<1x16x128xf32>,
    %258 = vector.extract_strided_slice %64 {offsets = [0, 6], sizes = [16, 1], strides = [1, 1]} : vector<16x8xf32> to vector<16x1xf32>
    %259 = vector.shape_cast %258 : vector<16x1xf32> to vector<16x1xf32>
    %260 = vector.broadcast %259 : vector<16x1xf32> to vector<16x64xf32>
    %261 = vector.extract_strided_slice %66 {offsets = [0, 6], sizes = [16, 1], strides = [1, 1]} : vector<16x8xf32> to vector<16x1xf32>
    %262 = vector.shape_cast %261 : vector<16x1xf32> to vector<16x1xf32>
    %263 = vector.broadcast %262 : vector<16x1xf32> to vector<16x64xf32>
    %264 = tpu.concatenate %260, %263 in 1 : vector<16x64xf32>, vector<16x64xf32> -> vector<16x128xf32>
    %265 = vector.extract_strided_slice %68 {offsets = [0, 6], sizes = [16, 1], strides = [1, 1]} : vector<16x8xf32> to vector<16x1xf32>
    %266 = vector.shape_cast %265 : vector<16x1xf32> to vector<16x1xf32>
    %267 = vector.broadcast %266 : vector<16x1xf32> to vector<16x64xf32>
    %268 = vector.extract_strided_slice %70 {offsets = [0, 6], sizes = [16, 1], strides = [1, 1]} : vector<16x8xf32> to vector<16x1xf32>
    %269 = vector.shape_cast %268 : vector<16x1xf32> to vector<16x1xf32>
    %270 = vector.broadcast %269 : vector<16x1xf32> to vector<16x64xf32>
    %271 = tpu.concatenate %267, %270 in 1 : vector<16x64xf32>, vector<16x64xf32> -> vector<16x128xf32>
    %c6_97 = arith.constant 6 : index
    %c0_98 = arith.constant 0 : index
    %c0_99 = arith.constant 0 : index
    %272 = vector.load %arg19[%c6_97, %c0_98, %c0_99] : memref<8x16x128xf32, #tpu.memory_space<vmem>>, vector<1x16x128xf32>
    %273 = vector.shape_cast %272 : vector<1x16x128xf32> to vector<16x128xf32>
    %274 = vector.shape_cast %271 : vector<16x128xf32> to vector<1x16x128xf32>
    tpu.vector_store %arg19[%c6_97, %c0_98, %c0_99], %274 {strides = array<i32>} : memref<8x16x128xf32, #tpu.memory_space<vmem>>, vector<1x16x128xf32>,
    %275 = vector.extract_strided_slice %61 {offsets = [6, 0], sizes = [1, 128], strides = [1, 1]} : vector<8x128xf32> to vector<1x128xf32>
    %276 = vector.broadcast %275 : vector<1x128xf32> to vector<16x128xf32>
    %277 = arith.mulf %276, %264 : vector<16x128xf32>
    %c6_100 = arith.constant 6 : index
    %c0_101 = arith.constant 0 : index
    %c0_102 = arith.constant 0 : index
    %278 = vector.load %arg18[%c6_100, %c0_101, %c0_102] : memref<8x16x128xf32, #tpu.memory_space<vmem>>, vector<1x16x128xf32>
    %279 = vector.shape_cast %278 : vector<1x16x128xf32> to vector<16x128xf32>
    %280 = vector.shape_cast %277 : vector<16x128xf32> to vector<1x16x128xf32>
    tpu.vector_store %arg18[%c6_100, %c0_101, %c0_102], %280 {strides = array<i32>} : memref<8x16x128xf32, #tpu.memory_space<vmem>>, vector<1x16x128xf32>,
    %281 = vector.extract_strided_slice %56 {offsets = [7, 0], sizes = [1, 128], strides = [1, 1]} : vector<8x128xf32> to vector<1x128xf32>
    %282 = vector.broadcast %281 : vector<1x128xf32> to vector<16x128xf32>
    %283 = arith.mulf %282, %62 : vector<16x128xf32>
    %284 = math.exp %283 : vector<16x128xf32>
    %c7 = arith.constant 7 : index
    %c0_103 = arith.constant 0 : index
    %c0_104 = arith.constant 0 : index
    %285 = vector.load %arg17[%c7, %c0_103, %c0_104] : memref<8x16x128xf32, #tpu.memory_space<vmem>>, vector<1x16x128xf32>
    %286 = vector.shape_cast %285 : vector<1x16x128xf32> to vector<16x128xf32>
    %287 = vector.shape_cast %284 : vector<16x128xf32> to vector<1x16x128xf32>
    tpu.vector_store %arg17[%c7, %c0_103, %c0_104], %287 {strides = array<i32>} : memref<8x16x128xf32, #tpu.memory_space<vmem>>, vector<1x16x128xf32>,
    %288 = vector.extract_strided_slice %64 {offsets = [0, 7], sizes = [16, 1], strides = [1, 1]} : vector<16x8xf32> to vector<16x1xf32>
    %289 = vector.shape_cast %288 : vector<16x1xf32> to vector<16x1xf32>
    %290 = vector.broadcast %289 : vector<16x1xf32> to vector<16x64xf32>
    %291 = vector.extract_strided_slice %66 {offsets = [0, 7], sizes = [16, 1], strides = [1, 1]} : vector<16x8xf32> to vector<16x1xf32>
    %292 = vector.shape_cast %291 : vector<16x1xf32> to vector<16x1xf32>
    %293 = vector.broadcast %292 : vector<16x1xf32> to vector<16x64xf32>
    %294 = tpu.concatenate %290, %293 in 1 : vector<16x64xf32>, vector<16x64xf32> -> vector<16x128xf32>
    %295 = vector.extract_strided_slice %68 {offsets = [0, 7], sizes = [16, 1], strides = [1, 1]} : vector<16x8xf32> to vector<16x1xf32>
    %296 = vector.shape_cast %295 : vector<16x1xf32> to vector<16x1xf32>
    %297 = vector.broadcast %296 : vector<16x1xf32> to vector<16x64xf32>
    %298 = vector.extract_strided_slice %70 {offsets = [0, 7], sizes = [16, 1], strides = [1, 1]} : vector<16x8xf32> to vector<16x1xf32>
    %299 = vector.shape_cast %298 : vector<16x1xf32> to vector<16x1xf32>
    %300 = vector.broadcast %299 : vector<16x1xf32> to vector<16x64xf32>
    %301 = tpu.concatenate %297, %300 in 1 : vector<16x64xf32>, vector<16x64xf32> -> vector<16x128xf32>
    %c7_105 = arith.constant 7 : index
    %c0_106 = arith.constant 0 : index
    %c0_107 = arith.constant 0 : index
    %302 = vector.load %arg19[%c7_105, %c0_106, %c0_107] : memref<8x16x128xf32, #tpu.memory_space<vmem>>, vector<1x16x128xf32>
    %303 = vector.shape_cast %302 : vector<1x16x128xf32> to vector<16x128xf32>
    %304 = vector.shape_cast %301 : vector<16x128xf32> to vector<1x16x128xf32>
    tpu.vector_store %arg19[%c7_105, %c0_106, %c0_107], %304 {strides = array<i32>} : memref<8x16x128xf32, #tpu.memory_space<vmem>>, vector<1x16x128xf32>,
    %305 = vector.extract_strided_slice %61 {offsets = [7, 0], sizes = [1, 128], strides = [1, 1]} : vector<8x128xf32> to vector<1x128xf32>
    %306 = vector.broadcast %305 : vector<1x128xf32> to vector<16x128xf32>
    %307 = arith.mulf %306, %294 : vector<16x128xf32>
    %c7_108 = arith.constant 7 : index
    %c0_109 = arith.constant 0 : index
    %c0_110 = arith.constant 0 : index
    %308 = vector.load %arg18[%c7_108, %c0_109, %c0_110] : memref<8x16x128xf32, #tpu.memory_space<vmem>>, vector<1x16x128xf32>
    %309 = vector.shape_cast %308 : vector<1x16x128xf32> to vector<16x128xf32>
    %310 = vector.shape_cast %307 : vector<16x128xf32> to vector<1x16x128xf32>
    tpu.vector_store %arg18[%c7_108, %c0_109, %c0_110], %310 {strides = array<i32>} : memref<8x16x128xf32, #tpu.memory_space<vmem>>, vector<1x16x128xf32>,
    %cst_111 = arith.constant 0.000000e+00 : f32
    %311 = vector.broadcast %cst_111 : f32 to vector<16x128xf32>
    %c0_112 = arith.constant 0 : index
    %c0_113 = arith.constant 0 : index
    %c0_114 = arith.constant 0 : index
    %312 = vector.load %arg17[%c0_112, %c0_113, %c0_114] : memref<8x16x128xf32, #tpu.memory_space<vmem>>, vector<1x16x128xf32>
    %313 = vector.shape_cast %312 : vector<1x16x128xf32> to vector<16x128xf32>
    %314 = arith.mulf %313, %311 : vector<16x128xf32>
    %c0_115 = arith.constant 0 : index
    %c0_116 = arith.constant 0 : index
    %c0_117 = arith.constant 0 : index
    %315 = vector.load %arg18[%c0_115, %c0_116, %c0_117] : memref<8x16x128xf32, #tpu.memory_space<vmem>>, vector<1x16x128xf32>
    %316 = vector.shape_cast %315 : vector<1x16x128xf32> to vector<16x128xf32>
    %317 = arith.addf %314, %316 : vector<16x128xf32>
    %c0_118 = arith.constant 0 : index
    %c0_119 = arith.constant 0 : index
    %c0_120 = arith.constant 0 : index
    %318 = vector.load %arg19[%c0_118, %c0_119, %c0_120] : memref<8x16x128xf32, #tpu.memory_space<vmem>>, vector<1x16x128xf32>
    %319 = vector.shape_cast %318 : vector<1x16x128xf32> to vector<16x128xf32>
    %320 = arith.mulf %317, %319 : vector<16x128xf32>
    %cst_121 = arith.constant dense<0.000000e+00> : vector<128xf32>
    %321 = vector.multi_reduction <add>, %320, %cst_121 [0] : vector<16x128xf32> to vector<128xf32>
    %322 = vector.shape_cast %321 : vector<128xf32> to vector<1x128xf32>
    %c0_122 = arith.constant 0 : index
    %c0_123 = arith.constant 0 : index
    %323 = vector.load %arg20[%c0_122, %c0_123] : memref<8x128xf32, #tpu.memory_space<vmem>>, vector<1x128xf32>
    tpu.vector_store %arg20[%c0_122, %c0_123], %322 {strides = array<i32>} : memref<8x128xf32, #tpu.memory_space<vmem>>, vector<1x128xf32>,
    %c1_124 = arith.constant 1 : index
    %c0_125 = arith.constant 0 : index
    %c0_126 = arith.constant 0 : index
    %324 = vector.load %arg17[%c1_124, %c0_125, %c0_126] : memref<8x16x128xf32, #tpu.memory_space<vmem>>, vector<1x16x128xf32>
    %325 = vector.shape_cast %324 : vector<1x16x128xf32> to vector<16x128xf32>
    %326 = arith.mulf %325, %317 : vector<16x128xf32>
    %c1_127 = arith.constant 1 : index
    %c0_128 = arith.constant 0 : index
    %c0_129 = arith.constant 0 : index
    %327 = vector.load %arg18[%c1_127, %c0_128, %c0_129] : memref<8x16x128xf32, #tpu.memory_space<vmem>>, vector<1x16x128xf32>
    %328 = vector.shape_cast %327 : vector<1x16x128xf32> to vector<16x128xf32>
    %329 = arith.addf %326, %328 : vector<16x128xf32>
    %c1_130 = arith.constant 1 : index
    %c0_131 = arith.constant 0 : index
    %c0_132 = arith.constant 0 : index
    %330 = vector.load %arg19[%c1_130, %c0_131, %c0_132] : memref<8x16x128xf32, #tpu.memory_space<vmem>>, vector<1x16x128xf32>
    %331 = vector.shape_cast %330 : vector<1x16x128xf32> to vector<16x128xf32>
    %332 = arith.mulf %329, %331 : vector<16x128xf32>
    %cst_133 = arith.constant dense<0.000000e+00> : vector<128xf32>
    %333 = vector.multi_reduction <add>, %332, %cst_133 [0] : vector<16x128xf32> to vector<128xf32>
    %334 = vector.shape_cast %333 : vector<128xf32> to vector<1x128xf32>
    %c1_134 = arith.constant 1 : index
    %c0_135 = arith.constant 0 : index
    %335 = vector.load %arg20[%c1_134, %c0_135] : memref<8x128xf32, #tpu.memory_space<vmem>>, vector<1x128xf32>
    tpu.vector_store %arg20[%c1_134, %c0_135], %334 {strides = array<i32>} : memref<8x128xf32, #tpu.memory_space<vmem>>, vector<1x128xf32>,
    %c2_136 = arith.constant 2 : index
    %c0_137 = arith.constant 0 : index
    %c0_138 = arith.constant 0 : index
    %336 = vector.load %arg17[%c2_136, %c0_137, %c0_138] : memref<8x16x128xf32, #tpu.memory_space<vmem>>, vector<1x16x128xf32>
    %337 = vector.shape_cast %336 : vector<1x16x128xf32> to vector<16x128xf32>
    %338 = arith.mulf %337, %329 : vector<16x128xf32>
    %c2_139 = arith.constant 2 : index
    %c0_140 = arith.constant 0 : index
    %c0_141 = arith.constant 0 : index
    %339 = vector.load %arg18[%c2_139, %c0_140, %c0_141] : memref<8x16x128xf32, #tpu.memory_space<vmem>>, vector<1x16x128xf32>
    %340 = vector.shape_cast %339 : vector<1x16x128xf32> to vector<16x128xf32>
    %341 = arith.addf %338, %340 : vector<16x128xf32>
    %c2_142 = arith.constant 2 : index
    %c0_143 = arith.constant 0 : index
    %c0_144 = arith.constant 0 : index
    %342 = vector.load %arg19[%c2_142, %c0_143, %c0_144] : memref<8x16x128xf32, #tpu.memory_space<vmem>>, vector<1x16x128xf32>
    %343 = vector.shape_cast %342 : vector<1x16x128xf32> to vector<16x128xf32>
    %344 = arith.mulf %341, %343 : vector<16x128xf32>
    %cst_145 = arith.constant dense<0.000000e+00> : vector<128xf32>
    %345 = vector.multi_reduction <add>, %344, %cst_145 [0] : vector<16x128xf32> to vector<128xf32>
    %346 = vector.shape_cast %345 : vector<128xf32> to vector<1x128xf32>
    %c2_146 = arith.constant 2 : index
    %c0_147 = arith.constant 0 : index
    %347 = vector.load %arg20[%c2_146, %c0_147] : memref<8x128xf32, #tpu.memory_space<vmem>>, vector<1x128xf32>
    tpu.vector_store %arg20[%c2_146, %c0_147], %346 {strides = array<i32>} : memref<8x128xf32, #tpu.memory_space<vmem>>, vector<1x128xf32>,
    %c3_148 = arith.constant 3 : index
    %c0_149 = arith.constant 0 : index
    %c0_150 = arith.constant 0 : index
    %348 = vector.load %arg17[%c3_148, %c0_149, %c0_150] : memref<8x16x128xf32, #tpu.memory_space<vmem>>, vector<1x16x128xf32>
    %349 = vector.shape_cast %348 : vector<1x16x128xf32> to vector<16x128xf32>
    %350 = arith.mulf %349, %341 : vector<16x128xf32>
    %c3_151 = arith.constant 3 : index
    %c0_152 = arith.constant 0 : index
    %c0_153 = arith.constant 0 : index
    %351 = vector.load %arg18[%c3_151, %c0_152, %c0_153] : memref<8x16x128xf32, #tpu.memory_space<vmem>>, vector<1x16x128xf32>
    %352 = vector.shape_cast %351 : vector<1x16x128xf32> to vector<16x128xf32>
    %353 = arith.addf %350, %352 : vector<16x128xf32>
    %c3_154 = arith.constant 3 : index
    %c0_155 = arith.constant 0 : index
    %c0_156 = arith.constant 0 : index
    %354 = vector.load %arg19[%c3_154, %c0_155, %c0_156] : memref<8x16x128xf32, #tpu.memory_space<vmem>>, vector<1x16x128xf32>
    %355 = vector.shape_cast %354 : vector<1x16x128xf32> to vector<16x128xf32>
    %356 = arith.mulf %353, %355 : vector<16x128xf32>
    %cst_157 = arith.constant dense<0.000000e+00> : vector<128xf32>
    %357 = vector.multi_reduction <add>, %356, %cst_157 [0] : vector<16x128xf32> to vector<128xf32>
    %358 = vector.shape_cast %357 : vector<128xf32> to vector<1x128xf32>
    %c3_158 = arith.constant 3 : index
    %c0_159 = arith.constant 0 : index
    %359 = vector.load %arg20[%c3_158, %c0_159] : memref<8x128xf32, #tpu.memory_space<vmem>>, vector<1x128xf32>
    tpu.vector_store %arg20[%c3_158, %c0_159], %358 {strides = array<i32>} : memref<8x128xf32, #tpu.memory_space<vmem>>, vector<1x128xf32>,
    %c4_160 = arith.constant 4 : index
    %c0_161 = arith.constant 0 : index
    %c0_162 = arith.constant 0 : index
    %360 = vector.load %arg17[%c4_160, %c0_161, %c0_162] : memref<8x16x128xf32, #tpu.memory_space<vmem>>, vector<1x16x128xf32>
    %361 = vector.shape_cast %360 : vector<1x16x128xf32> to vector<16x128xf32>
    %362 = arith.mulf %361, %353 : vector<16x128xf32>
    %c4_163 = arith.constant 4 : index
    %c0_164 = arith.constant 0 : index
    %c0_165 = arith.constant 0 : index
    %363 = vector.load %arg18[%c4_163, %c0_164, %c0_165] : memref<8x16x128xf32, #tpu.memory_space<vmem>>, vector<1x16x128xf32>
    %364 = vector.shape_cast %363 : vector<1x16x128xf32> to vector<16x128xf32>
    %365 = arith.addf %362, %364 : vector<16x128xf32>
    %c4_166 = arith.constant 4 : index
    %c0_167 = arith.constant 0 : index
    %c0_168 = arith.constant 0 : index
    %366 = vector.load %arg19[%c4_166, %c0_167, %c0_168] : memref<8x16x128xf32, #tpu.memory_space<vmem>>, vector<1x16x128xf32>
    %367 = vector.shape_cast %366 : vector<1x16x128xf32> to vector<16x128xf32>
    %368 = arith.mulf %365, %367 : vector<16x128xf32>
    %cst_169 = arith.constant dense<0.000000e+00> : vector<128xf32>
    %369 = vector.multi_reduction <add>, %368, %cst_169 [0] : vector<16x128xf32> to vector<128xf32>
    %370 = vector.shape_cast %369 : vector<128xf32> to vector<1x128xf32>
    %c4_170 = arith.constant 4 : index
    %c0_171 = arith.constant 0 : index
    %371 = vector.load %arg20[%c4_170, %c0_171] : memref<8x128xf32, #tpu.memory_space<vmem>>, vector<1x128xf32>
    tpu.vector_store %arg20[%c4_170, %c0_171], %370 {strides = array<i32>} : memref<8x128xf32, #tpu.memory_space<vmem>>, vector<1x128xf32>,
    %c5_172 = arith.constant 5 : index
    %c0_173 = arith.constant 0 : index
    %c0_174 = arith.constant 0 : index
    %372 = vector.load %arg17[%c5_172, %c0_173, %c0_174] : memref<8x16x128xf32, #tpu.memory_space<vmem>>, vector<1x16x128xf32>
    %373 = vector.shape_cast %372 : vector<1x16x128xf32> to vector<16x128xf32>
    %374 = arith.mulf %373, %365 : vector<16x128xf32>
    %c5_175 = arith.constant 5 : index
    %c0_176 = arith.constant 0 : index
    %c0_177 = arith.constant 0 : index
    %375 = vector.load %arg18[%c5_175, %c0_176, %c0_177] : memref<8x16x128xf32, #tpu.memory_space<vmem>>, vector<1x16x128xf32>
    %376 = vector.shape_cast %375 : vector<1x16x128xf32> to vector<16x128xf32>
    %377 = arith.addf %374, %376 : vector<16x128xf32>
    %c5_178 = arith.constant 5 : index
    %c0_179 = arith.constant 0 : index
    %c0_180 = arith.constant 0 : index
    %378 = vector.load %arg19[%c5_178, %c0_179, %c0_180] : memref<8x16x128xf32, #tpu.memory_space<vmem>>, vector<1x16x128xf32>
    %379 = vector.shape_cast %378 : vector<1x16x128xf32> to vector<16x128xf32>
    %380 = arith.mulf %377, %379 : vector<16x128xf32>
    %cst_181 = arith.constant dense<0.000000e+00> : vector<128xf32>
    %381 = vector.multi_reduction <add>, %380, %cst_181 [0] : vector<16x128xf32> to vector<128xf32>
    %382 = vector.shape_cast %381 : vector<128xf32> to vector<1x128xf32>
    %c5_182 = arith.constant 5 : index
    %c0_183 = arith.constant 0 : index
    %383 = vector.load %arg20[%c5_182, %c0_183] : memref<8x128xf32, #tpu.memory_space<vmem>>, vector<1x128xf32>
    tpu.vector_store %arg20[%c5_182, %c0_183], %382 {strides = array<i32>} : memref<8x128xf32, #tpu.memory_space<vmem>>, vector<1x128xf32>,
    %c6_184 = arith.constant 6 : index
    %c0_185 = arith.constant 0 : index
    %c0_186 = arith.constant 0 : index
    %384 = vector.load %arg17[%c6_184, %c0_185, %c0_186] : memref<8x16x128xf32, #tpu.memory_space<vmem>>, vector<1x16x128xf32>
    %385 = vector.shape_cast %384 : vector<1x16x128xf32> to vector<16x128xf32>
    %386 = arith.mulf %385, %377 : vector<16x128xf32>
    %c6_187 = arith.constant 6 : index
    %c0_188 = arith.constant 0 : index
    %c0_189 = arith.constant 0 : index
    %387 = vector.load %arg18[%c6_187, %c0_188, %c0_189] : memref<8x16x128xf32, #tpu.memory_space<vmem>>, vector<1x16x128xf32>
    %388 = vector.shape_cast %387 : vector<1x16x128xf32> to vector<16x128xf32>
    %389 = arith.addf %386, %388 : vector<16x128xf32>
    %c6_190 = arith.constant 6 : index
    %c0_191 = arith.constant 0 : index
    %c0_192 = arith.constant 0 : index
    %390 = vector.load %arg19[%c6_190, %c0_191, %c0_192] : memref<8x16x128xf32, #tpu.memory_space<vmem>>, vector<1x16x128xf32>
    %391 = vector.shape_cast %390 : vector<1x16x128xf32> to vector<16x128xf32>
    %392 = arith.mulf %389, %391 : vector<16x128xf32>
    %cst_193 = arith.constant dense<0.000000e+00> : vector<128xf32>
    %393 = vector.multi_reduction <add>, %392, %cst_193 [0] : vector<16x128xf32> to vector<128xf32>
    %394 = vector.shape_cast %393 : vector<128xf32> to vector<1x128xf32>
    %c6_194 = arith.constant 6 : index
    %c0_195 = arith.constant 0 : index
    %395 = vector.load %arg20[%c6_194, %c0_195] : memref<8x128xf32, #tpu.memory_space<vmem>>, vector<1x128xf32>
    tpu.vector_store %arg20[%c6_194, %c0_195], %394 {strides = array<i32>} : memref<8x128xf32, #tpu.memory_space<vmem>>, vector<1x128xf32>,
    %c7_196 = arith.constant 7 : index
    %c0_197 = arith.constant 0 : index
    %c0_198 = arith.constant 0 : index
    %396 = vector.load %arg17[%c7_196, %c0_197, %c0_198] : memref<8x16x128xf32, #tpu.memory_space<vmem>>, vector<1x16x128xf32>
    %397 = vector.shape_cast %396 : vector<1x16x128xf32> to vector<16x128xf32>
    %398 = arith.mulf %397, %389 : vector<16x128xf32>
    %c7_199 = arith.constant 7 : index
    %c0_200 = arith.constant 0 : index
    %c0_201 = arith.constant 0 : index
    %399 = vector.load %arg18[%c7_199, %c0_200, %c0_201] : memref<8x16x128xf32, #tpu.memory_space<vmem>>, vector<1x16x128xf32>
    %400 = vector.shape_cast %399 : vector<1x16x128xf32> to vector<16x128xf32>
    %401 = arith.addf %398, %400 : vector<16x128xf32>
    %c7_202 = arith.constant 7 : index
    %c0_203 = arith.constant 0 : index
    %c0_204 = arith.constant 0 : index
    %402 = vector.load %arg19[%c7_202, %c0_203, %c0_204] : memref<8x16x128xf32, #tpu.memory_space<vmem>>, vector<1x16x128xf32>
    %403 = vector.shape_cast %402 : vector<1x16x128xf32> to vector<16x128xf32>
    %404 = arith.mulf %401, %403 : vector<16x128xf32>
    %cst_205 = arith.constant dense<0.000000e+00> : vector<128xf32>
    %405 = vector.multi_reduction <add>, %404, %cst_205 [0] : vector<16x128xf32> to vector<128xf32>
    %406 = vector.shape_cast %405 : vector<128xf32> to vector<1x128xf32>
    %c7_206 = arith.constant 7 : index
    %c0_207 = arith.constant 0 : index
    %407 = vector.load %arg20[%c7_206, %c0_207] : memref<8x128xf32, #tpu.memory_space<vmem>>, vector<1x128xf32>
    tpu.vector_store %arg20[%c7_206, %c0_207], %406 {strides = array<i32>} : memref<8x128xf32, #tpu.memory_space<vmem>>, vector<1x128xf32>,
    %c0_208 = arith.constant 0 : index
    %c0_209 = arith.constant 0 : index
    %408 = vector.load %arg20[%c0_208, %c0_209] : memref<8x128xf32, #tpu.memory_space<vmem>>, vector<8x128xf32>
    %c0_210 = arith.constant 0 : index
    %c0_211 = arith.constant 0 : index
    %409 = vector.load %arg11[%c0_210, %c0_211] : memref<1x128xf32, #tpu.memory_space<vmem>>, vector<1x128xf32>
    %410 = vector.broadcast %409 : vector<1x128xf32> to vector<8x128xf32>
    %411 = arith.mulf %37, %410 : vector<8x128xf32>
    %412 = arith.addf %408, %411 : vector<8x128xf32>
    %413 = arith.negf %4 : vector<8x128xf32>
    %414 = math.exp %413 : vector<8x128xf32>
    %cst_212 = arith.constant 1.000000e+00 : f32
    %415 = vector.broadcast %cst_212 : f32 to vector<8x128xf32>
    %416 = arith.addf %415, %414 : vector<8x128xf32>
    %417 = arith.divf %415, %416 : vector<8x128xf32>
    %418 = arith.mulf %4, %417 : vector<8x128xf32>
    %419 = arith.mulf %412, %418 : vector<8x128xf32>
    %c0_213 = arith.constant 0 : index
    %c0_214 = arith.constant 0 : index
    %420 = vector.load %arg12[%c0_213, %c0_214] : memref<128x64xf32, #tpu.memory_space<vmem>>, vector<128x64xf32>
    %cst_215 = arith.constant dense<0.000000e+00> : vector<8x64xf32>
    %421 = tpu.matmul %419, %420, %cst_215 {dimension_numbers = #tpu.dot_dimension_numbers<[1], [0], [0], [1], [0, 0, 1, 1], [], []>} : vector<8x128xf32>, vector<128x64xf32>, vector<8x64xf32> -> vector<8x64xf32>
    %422 = arith.addf %421, %0 : vector<8x64xf32>
    %423 = arith.mulf %422, %422 : vector<8x64xf32>
    %c0_216 = arith.constant 0 : index
    %c0_217 = arith.constant 0 : index
    %424 = vector.load %arg14[%c0_216, %c0_217] : memref<64x64xf32, #tpu.memory_space<vmem>>, vector<64x64xf32>
    %cst_218 = arith.constant dense<0.000000e+00> : vector<8x64xf32>
    %425 = tpu.matmul %423, %424, %cst_218 {dimension_numbers = #tpu.dot_dimension_numbers<[1], [0], [0], [1], [0, 0, 1, 1], [], []>} : vector<8x64xf32>, vector<64x64xf32>, vector<8x64xf32> -> vector<8x64xf32>
    %cst_219 = arith.constant 9.99999974E-6 : f32
    %426 = vector.broadcast %cst_219 : f32 to vector<8x64xf32>
    %427 = arith.addf %425, %426 : vector<8x64xf32>
    %428 = math.rsqrt %427 : vector<8x64xf32>
    %429 = arith.mulf %422, %428 : vector<8x64xf32>
    %c0_220 = arith.constant 0 : index
    %c0_221 = arith.constant 0 : index
    %430 = vector.load %arg13[%c0_220, %c0_221] : memref<1x64xf32, #tpu.memory_space<vmem>>, vector<1x64xf32>
    %431 = vector.broadcast %430 : vector<1x64xf32> to vector<8x64xf32>
    %432 = arith.mulf %429, %431 : vector<8x64xf32>
    %c0_222 = arith.constant 0 : index
    %c0_223 = arith.constant 0 : index
    %433 = vector.load %arg15[%c0_222, %c0_223] : memref<8x64xf32, #tpu.memory_space<vmem>>, vector<8x64xf32>
    tpu.vector_store %arg15[%c0_222, %c0_223], %432 {strides = array<i32>} : memref<8x64xf32, #tpu.memory_space<vmem>>, vector<8x64xf32>,
    return
  }
  func.func @transform_0(%arg0: i32) -> (i32, i32) {
    %c0_i32 = arith.constant 0 : i32
    %c0_i32_0 = arith.constant 0 : i32
    %c0_i32_1 = arith.constant 0 : i32
    return %c0_i32, %c0_i32_0 : i32, i32
  }
  func.func @transform_1(%arg0: i32) -> (i32, i32) {
    %c0_i32 = arith.constant 0 : i32
    %c0_i32_0 = arith.constant 0 : i32
    %c0_i32_1 = arith.constant 0 : i32
    return %c0_i32, %c0_i32_0 : i32, i32
  }
  func.func @transform_2(%arg0: i32) -> (i32, i32) {
    %c0_i32 = arith.constant 0 : i32
    %c0_i32_0 = arith.constant 0 : i32
    %c0_i32_1 = arith.constant 0 : i32
    return %c0_i32, %c0_i32_0 : i32, i32
  }
  func.func @transform_3(%arg0: i32) -> (i32, i32) {
    %c0_i32 = arith.constant 0 : i32
    %c0_i32_0 = arith.constant 0 : i32
    %c0_i32_1 = arith.constant 0 : i32
    return %c0_i32, %c0_i32_0 : i32, i32
  }
  func.func @transform_4(%arg0: i32) -> (i32, i32) {
    %c0_i32 = arith.constant 0 : i32
    %c0_i32_0 = arith.constant 0 : i32
    %c0_i32_1 = arith.constant 0 : i32
    return %c0_i32, %c0_i32_0 : i32, i32
  }
  func.func @transform_5(%arg0: i32) -> (i32, i32) {
    %c0_i32 = arith.constant 0 : i32
    %c0_i32_0 = arith.constant 0 : i32
    %c0_i32_1 = arith.constant 0 : i32
    return %c0_i32, %c0_i32_0 : i32, i32
  }
  func.func @transform_6(%arg0: i32) -> (i32, i32) {
    %c0_i32 = arith.constant 0 : i32
    %c0_i32_0 = arith.constant 0 : i32
    %c0_i32_1 = arith.constant 0 : i32
    return %c0_i32, %c0_i32_0 : i32, i32
  }
  func.func @transform_7(%arg0: i32) -> (i32, i32) {
    %c0_i32 = arith.constant 0 : i32
    %c0_i32_0 = arith.constant 0 : i32
    %c0_i32_1 = arith.constant 0 : i32
    return %c0_i32, %c0_i32_0 : i32, i32
  }
  func.func @transform_8(%arg0: i32) -> (i32, i32) {
    %c0_i32 = arith.constant 0 : i32
    %c0_i32_0 = arith.constant 0 : i32
    %c0_i32_1 = arith.constant 0 : i32
    return %c0_i32, %c0_i32_0 : i32, i32
  }
  func.func @transform_9(%arg0: i32) -> (i32, i32) {
    %c0_i32 = arith.constant 0 : i32
    %c0_i32_0 = arith.constant 0 : i32
    %c0_i32_1 = arith.constant 0 : i32
    return %c0_i32, %c0_i32_0 : i32, i32
  }
  func.func @transform_10(%arg0: i32) -> (i32, i32) {
    %c0_i32 = arith.constant 0 : i32
    %c0_i32_0 = arith.constant 0 : i32
    %c0_i32_1 = arith.constant 0 : i32
    return %c0_i32, %c0_i32_0 : i32, i32
  }
  func.func @transform_11(%arg0: i32) -> (i32, i32) {
    %c0_i32 = arith.constant 0 : i32
    %c0_i32_0 = arith.constant 0 : i32
    %c0_i32_1 = arith.constant 0 : i32
    return %c0_i32, %c0_i32_0 : i32, i32
  }
  func.func @transform_12(%arg0: i32) -> (i32, i32) {
    %c0_i32 = arith.constant 0 : i32
    %c0_i32_0 = arith.constant 0 : i32
    %c0_i32_1 = arith.constant 0 : i32
    return %c0_i32, %c0_i32_0 : i32, i32
  }
  func.func @transform_13(%arg0: i32) -> (i32, i32) {
    %c0_i32 = arith.constant 0 : i32
    %c0_i32_0 = arith.constant 0 : i32
    %c0_i32_1 = arith.constant 0 : i32
    return %c0_i32, %c0_i32_0 : i32, i32
  }
  func.func @transform_14(%arg0: i32) -> (i32, i32) {
    %c0_i32 = arith.constant 0 : i32
    %c0_i32_0 = arith.constant 0 : i32
    %c0_i32_1 = arith.constant 0 : i32
    return %c0_i32, %c0_i32_0 : i32, i32
  }
}

</mosaic_0001>

<llo_original>
// kernel: tpu_custom_call.1
$region0: #{tpu_custom_call.1}
  #allocation0 [shape = 'u32[]', space=smem, size = 0x4, offset = 0x4, fixed_abs, tag = 'smem constant byte address 0x4 - core index']
  #allocation1 [shape = 'u32[72,128]{1,0:T(1,128)}', space=vmem, size = 0x9000, scoped, tag = 'internal scratch']
  #allocation2 [shape = 'f32[11,128]{1,0:T(8,128)}', space=vmem, size = 0x2000, scoped, tag = 'scratch operand']
  #allocation3 [shape = 'f32[8,16,128]{2,1,0:T(8,128)}', space=vmem, size = 0x10000, scoped, tag = 'scratch operand']
  #allocation4 [shape = 'f32[8,16,128]{2,1,0:T(8,128)}', space=vmem, size = 0x10000, scoped, tag = 'scratch operand']
  #allocation5 [shape = 'f32[8,16,128]{2,1,0:T(8,128)}', space=vmem, size = 0x10000, scoped, tag = 'scratch operand']
  #allocation6 [shape = 'f32[8,128]{1,0:T(8,128)}', space=vmem, size = 0x1000, scoped, tag = 'scratch operand']
  %s0 = inlined_call_operand.vmem [shape: f32[8,64], index: 0, kind: input, shape index: {}]
  %s1 = inlined_call_operand.vmem [shape: f32[64,128], index: 1, kind: input, shape index: {}]
  %s2 = inlined_call_operand.vmem [shape: f32[64,128], index: 2, kind: input, shape index: {}]
  %s3 = inlined_call_operand.vmem [shape: f32[4,128], index: 3, kind: input, shape index: {}]
  %s4 = inlined_call_operand.vmem [shape: f32[1,128], index: 4, kind: input, shape index: {}]
  %s5 = inlined_call_operand.vmem [shape: f32[128,128], index: 5, kind: input, shape index: {}]
  %s6 = inlined_call_operand.vmem [shape: f32[128,32], index: 6, kind: input, shape index: {}]
  %s7 = inlined_call_operand.vmem [shape: f32[128,32], index: 7, kind: input, shape index: {}]
  %s8 = inlined_call_operand.vmem [shape: f32[1,128], index: 8, kind: input, shape index: {}]
  %s9 = inlined_call_operand.vmem [shape: f32[16,128], index: 9, kind: input, shape index: {}]
  %s10 = inlined_call_operand.vmem [shape: f32[1,128], index: 10, kind: input, shape index: {}]
  %s11 = inlined_call_operand.vmem [shape: f32[128,64], index: 11, kind: input, shape index: {}]
  %s12 = inlined_call_operand.vmem [shape: f32[1,64], index: 12, kind: input, shape index: {}]
  %s13 = inlined_call_operand.vmem [shape: f32[64,64], index: 13, kind: input, shape index: {}]
  %s14 = inlined_call_operand.hbm [shape: f32[8,64], index: 14, kind: output, shape index: {}]
  %s15 = sld [smem:[#allocation0]]
  $region66: #{tpu_custom_call.1} parent=0
    _
  %s17 = ssub.s32 1, %s15
  %s18 = scalar_select 0, %s17, %s15
  $region1: #{tpu_custom_call.1} parent=0
    #allocation7 [shape = 'u8[4096]{0}', space=vmem, size = 0x1000, scoped, tag = 'output window, operand 0, single buffered']
    #allocation8 [shape = 's32[1]{0}', space=sflag, size = 0x4, scoped, tag = 'scoped memory for tpu_custom_call.1']
    %19 = vsyncpa [#allocation8], 0
    // Predicated region
    $region2: #{tpu_custom_call.1} parent=1 // pred_check
      _
    $region3: #{tpu_custom_call.1} parent=1 // pred_check_branch
      %21 = sbr.rel (0) target = $region5
    $region4: #{tpu_custom_call.1} parent=1 // pred_region
      _
    $region5: #{tpu_custom_call.1} parent=1 // pred_fallthru
      _
    // Predicated region
    $region6: #{tpu_custom_call.1} parent=1 // pred_check
      _
    $region7: #{tpu_custom_call.1} parent=1 // pred_check_branch
      %23 = sbr.rel (0) target = $region9
    $region8: #{tpu_custom_call.1} parent=1 // pred_region
      _
    $region9: #{tpu_custom_call.1} parent=1 // pred_fallthru
      _
    // Predicated region
    $region10: #{tpu_custom_call.1} parent=1 // pred_check
      _
    $region11: #{tpu_custom_call.1} parent=1 // pred_check_branch
      %25 = sbr.rel (0) target = $region13
    $region12: #{tpu_custom_call.1} parent=1 // pred_region
      _
    $region13: #{tpu_custom_call.1} parent=1 // pred_fallthru
      _
    // Predicated region
    $region14: #{tpu_custom_call.1} parent=1 // pred_check
      _
    $region15: #{tpu_custom_call.1} parent=1 // pred_check_branch
      %27 = sbr.rel (0) target = $region17
    $region16: #{tpu_custom_call.1} parent=1 // pred_region
      _
    $region17: #{tpu_custom_call.1} parent=1 // pred_fallthru
      _
    // Predicated region
    $region18: #{tpu_custom_call.1} parent=1 // pred_check
      _
    $region19: #{tpu_custom_call.1} parent=1 // pred_check_branch
      %29 = sbr.rel (0) target = $region21
    $region20: #{tpu_custom_call.1} parent=1 // pred_region
      _
    $region21: #{tpu_custom_call.1} parent=1 // pred_fallthru
      _
    // Predicated region
    $region22: #{tpu_custom_call.1} parent=1 // pred_check
      _
    $region23: #{tpu_custom_call.1} parent=1 // pred_check_branch
      %31 = sbr.rel (0) target = $region25
    $region24: #{tpu_custom_call.1} parent=1 // pred_region
      _
    $region25: #{tpu_custom_call.1} parent=1 // pred_fallthru
      _
    // Predicated region
    $region26: #{tpu_custom_call.1} parent=1 // pred_check
      _
    $region27: #{tpu_custom_call.1} parent=1 // pred_check_branch
      %33 = sbr.rel (0) target = $region29
    $region28: #{tpu_custom_call.1} parent=1 // pred_region
      _
    $region29: #{tpu_custom_call.1} parent=1 // pred_fallthru
      _
    // Predicated region
    $region30: #{tpu_custom_call.1} parent=1 // pred_check
      _
    $region31: #{tpu_custom_call.1} parent=1 // pred_check_branch
      %35 = sbr.rel (0) target = $region33
    $region32: #{tpu_custom_call.1} parent=1 // pred_region
      _
    $region33: #{tpu_custom_call.1} parent=1 // pred_fallthru
      _
    // Predicated region
    $region34: #{tpu_custom_call.1} parent=1 // pred_check
      _
    $region35: #{tpu_custom_call.1} parent=1 // pred_check_branch
      %37 = sbr.rel (0) target = $region37
    $region36: #{tpu_custom_call.1} parent=1 // pred_region
      _
    $region37: #{tpu_custom_call.1} parent=1 // pred_fallthru
      _
    // Predicated region
    $region38: #{tpu_custom_call.1} parent=1 // pred_check
      _
    $region39: #{tpu_custom_call.1} parent=1 // pred_check_branch
      %39 = sbr.rel (0) target = $region41
    $region40: #{tpu_custom_call.1} parent=1 // pred_region
      _
    $region41: #{tpu_custom_call.1} parent=1 // pred_fallthru
      _
    // Predicated region
    $region42: #{tpu_custom_call.1} parent=1 // pred_check
      _
    $region43: #{tpu_custom_call.1} parent=1 // pred_check_branch
      %41 = sbr.rel (0) target = $region45
    $region44: #{tpu_custom_call.1} parent=1 // pred_region
      _
    $region45: #{tpu_custom_call.1} parent=1 // pred_fallthru
      _
    // Predicated region
    $region46: #{tpu_custom_call.1} parent=1 // pred_check
      _
    $region47: #{tpu_custom_call.1} parent=1 // pred_check_branch
      %43 = sbr.rel (0) target = $region49
    $region48: #{tpu_custom_call.1} parent=1 // pred_region
      _
    $region49: #{tpu_custom_call.1} parent=1 // pred_fallthru
      _
    // Predicated region
    $region50: #{tpu_custom_call.1} parent=1 // pred_check
      _
    $region51: #{tpu_custom_call.1} parent=1 // pred_check_branch
      %45 = sbr.rel (0) target = $region53
    $region52: #{tpu_custom_call.1} parent=1 // pred_region
      _
    $region53: #{tpu_custom_call.1} parent=1 // pred_fallthru
      _
    // Predicated region
    $region54: #{tpu_custom_call.1} parent=1 // pred_check
      _
    $region55: #{tpu_custom_call.1} parent=1 // pred_check_branch
      %47 = sbr.rel (0) target = $region57
    $region56: #{tpu_custom_call.1} parent=1 // pred_region
      _
    $region57: #{tpu_custom_call.1} parent=1 // pred_fallthru
      _
    %v48 = vld [vmem:[%s0] sm:$0xff]
    %v49 = vld [vmem:[%s1] sm:$0xff]
    %v50 = vld [vmem:[%s1 + $0x8] sm:$0xff]
    %v51 = vld [vmem:[%s1 + $0x10] sm:$0xff]
    %v52 = vld [vmem:[%s1 + $0x18] sm:$0xff]
    %v53 = vld [vmem:[%s1 + $0x20] sm:$0xff]
    %v54 = vld [vmem:[%s1 + $0x28] sm:$0xff]
    %v55 = vld [vmem:[%s1 + $0x30] sm:$0xff]
    %v56 = vld [vmem:[%s1 + $0x38] sm:$0xff]
    %vm57 = vcmask 523264
    %v59 = vsel %vm57, %v48, 0
    %61 = vmatpush.msra.mxu0 0.0
    %62 = vmatpush.msra.mxu0 0.0
    %63 = vmatpush.msra.mxu0 0.0
    %64 = vmatpush.msra.mxu0 0.0
    %65 = vmatpush.msra.mxu0 0.0
    %66 = vmatpush.msra.mxu0 0.0
    %67 = vmatpush.msra.mxu0 0.0
    %68 = vmatpush.msra.mxu0 0.0
    %69 = vmatpush.msra.mxu0 %v56
    %70 = vmatpush.msra.mxu0 %v55
    %71 = vmatpush.msra.mxu0 %v54
    %72 = vmatpush.msra.mxu0 %v53
    %73 = vmatpush.msra.mxu0 %v52
    %74 = vmatpush.msra.mxu0 %v51
    %75 = vmatpush.msra.mxu0 %v50
    %76 = vmatpush.msra.mxu0 %v49
    %77 = vmatmul.f32.gmra.mxu0 %v59
    %v78 = vpop.f32.mrf.mxu0
    %v79 = vadd.f32 0.0, %v78
    %80 = vdwg.mxu0
    %v81 = vld [vmem:[%s2] sm:$0xff]
    %v82 = vld [vmem:[%s2 + $0x8] sm:$0xff]
    %v83 = vld [vmem:[%s2 + $0x10] sm:$0xff]
    %v84 = vld [vmem:[%s2 + $0x18] sm:$0xff]
    %v85 = vld [vmem:[%s2 + $0x20] sm:$0xff]
    %v86 = vld [vmem:[%s2 + $0x28] sm:$0xff]
    %v87 = vld [vmem:[%s2 + $0x30] sm:$0xff]
    %v88 = vld [vmem:[%s2 + $0x38] sm:$0xff]
    %89 = vmatpush.msra.mxu0 0.0
    %90 = vmatpush.msra.mxu0 0.0
    %91 = vmatpush.msra.mxu0 0.0
    %92 = vmatpush.msra.mxu0 0.0
    %93 = vmatpush.msra.mxu0 0.0
    %94 = vmatpush.msra.mxu0 0.0
    %95 = vmatpush.msra.mxu0 0.0
    %96 = vmatpush.msra.mxu0 0.0
    %97 = vmatpush.msra.mxu0 %v88
    %98 = vmatpush.msra.mxu0 %v87
    %99 = vmatpush.msra.mxu0 %v86
    %100 = vmatpush.msra.mxu0 %v85
    %101 = vmatpush.msra.mxu0 %v84
    %102 = vmatpush.msra.mxu0 %v83
    %103 = vmatpush.msra.mxu0 %v82
    %104 = vmatpush.msra.mxu0 %v81
    %105 = vmatmul.f32.gmra.mxu0 %v59
    %v106 = vpop.f32.mrf.mxu0
    %v107 = vadd.f32 0.0, %v106
    %108 = vdwg.mxu0
    %109 = vst [vmem:[#allocation2] sm:$0x7] 0.0
    %110 = vst [vmem:[#allocation2 + $0x3] sm:$0xff] %v79
    %v111 = vld [vmem:[%s4] sm:$0x1]
    %v113 = vperm.slane %v111, 0
    %v115 = vadd.f32 %v113, 0.0
    %v116 = vld [vmem:[#allocation2] sm:$0xff]
    %v117 = vld [vmem:[%s3] sm:$0x1]
    %v118 = vperm.slane %v117, 0
    %v119 = vmul.f32 %v116, %v118
    %v120 = vadd.f32 %v115, %v119
    %v121 = vld [vmem:[#allocation2 + $0x1] sm:$0xff]
    %v122 = vld [vmem:[%s3 + $0x1] sm:$0x1]
    %v123 = vperm.slane %v122, 0
    %v124 = vmul.f32 %v121, %v123
    %v125 = vadd.f32 %v120, %v124
    %v126 = vld [vmem:[#allocation2 + $0x2] sm:$0xff]
    %v127 = vld [vmem:[%s3 + $0x2] sm:$0x1]
    %v128 = vperm.slane %v127, 0
    %v129 = vmul.f32 %v126, %v128
    %v130 = vadd.f32 %v125, %v129
    %v131 = vld [vmem:[#allocation2 + $0x3] sm:$0xff]
    %v132 = vld [vmem:[%s3 + $0x3] sm:$0x1]
    %v133 = vperm.slane %v132, 0
    %v134 = vmul.f32 %v131, %v133
    %v135 = vadd.f32 %v130, %v134
    %v136 = vxor.u32 %v135, 2147483648
    %v137 = vmul.f32 %v136, 1.442695
    %v138 = vpow.pop %v137
    %v139 = vadd.f32 %v138, 1.0
    %v140 = vrcp.pop %v139
    %v141 = vmul.f32 %v139, %v140
    %v142 = vsub.f32 1.0, %v141
    %v143 = vmul.f32 %v140, %v142
    %v144 = vadd.f32 %v140, %v143
    %vm145 = vweird.f32 %v139
    %vm146 = vweird.f32 %v140
    %vm147 = vmor %vm145, %vm146
    %v148 = vsel %vm147, %v140, %v144
    %v149 = vand.u32 2147483647, %v139
    %vm150 = vcmp.eq.f32.partialorder %v149, 8.507059e+37
    %v151 = vand.u32 %v139, 2147483648
    %v152 = vor.u32 1.1754944e-38, %v151
    %v153 = vsel %vm150, %v152, %v148
    %v154 = vmul.f32 1.0, %v153
    %v155 = vmul.f32 %v135, %v154
    %v156 = vld [vmem:[%s5] sm:$0xff]
    %v157 = vld [vmem:[%s5 + $0x8] sm:$0xff]
    %v158 = vld [vmem:[%s5 + $0x10] sm:$0xff]
    %v159 = vld [vmem:[%s5 + $0x18] sm:$0xff]
    %v160 = vld [vmem:[%s5 + $0x20] sm:$0xff]
    %v161 = vld [vmem:[%s5 + $0x28] sm:$0xff]
    %v162 = vld [vmem:[%s5 + $0x30] sm:$0xff]
    %v163 = vld [vmem:[%s5 + $0x38] sm:$0xff]
    %v164 = vld [vmem:[%s5 + $0x40] sm:$0xff]
    %v165 = vld [vmem:[%s5 + $0x48] sm:$0xff]
    %v166 = vld [vmem:[%s5 + $0x50] sm:$0xff]
    %v167 = vld [vmem:[%s5 + $0x58] sm:$0xff]
    %v168 = vld [vmem:[%s5 + $0x60] sm:$0xff]
    %v169 = vld [vmem:[%s5 + $0x68] sm:$0xff]
    %v170 = vld [vmem:[%s5 + $0x70] sm:$0xff]
    %v171 = vld [vmem:[%s5 + $0x78] sm:$0xff]
    %v172 = vld [vmem:[%s8] sm:$0x1]
    %v174 = vperm.slane %v172, 0
    %176 = vmatpush.msra.mxu0 %v171
    %177 = vmatpush.msra.mxu0 %v170
    %178 = vmatpush.msra.mxu0 %v169
    %179 = vmatpush.msra.mxu0 %v168
    %180 = vmatpush.msra.mxu0 %v167
    %181 = vmatpush.msra.mxu0 %v166
    %182 = vmatpush.msra.mxu0 %v165
    %183 = vmatpush.msra.mxu0 %v164
    %184 = vmatpush.msra.mxu0 %v163
    %185 = vmatpush.msra.mxu0 %v162
    %186 = vmatpush.msra.mxu0 %v161
    %187 = vmatpush.msra.mxu0 %v160
    %188 = vmatpush.msra.mxu0 %v159
    %189 = vmatpush.msra.mxu0 %v158
    %190 = vmatpush.msra.mxu0 %v157
    %191 = vmatpush.msra.mxu0 %v156
    %192 = vmatmul.f32.gmra.mxu0 %v155
    %v193 = vpop.f32.mrf.mxu0
    %v194 = vadd.f32 %v174, %v193
    %195 = vdwg.mxu0
    %v196 = vmax.f32 %v194, 0.0
    %vm197 = vcmp.ne.f32.partialorder %v194, %v194
    %v198 = vadd.f32 %v194, 0.0
    %v199 = vand.u32 2147483647, %v194
    %v200 = vsub.f32 0.0, %v199
    %v201 = vmul.f32 %v200, 1.442695
    %v202 = vpow.pop %v201
    %v203 = vadd.f32 %v202, 1.0
    %v204 = vlog2.pop %v203
    %v205 = vmul.f32 %v204, 0.6931472
    %v206 = vmul.f32 -0.5, %v202
    %v207 = vadd.f32 %v206, 1.0
    %v208 = vmul.f32 %v207, %v202
    %v209 = vand.u32 2147483647, %v202
    %vm210 = vcmp.lt.f32.partialorder %v209, 0.0004427343
    %v211 = vsel %vm210, %v208, %v205
    %v212 = vadd.f32 %v196, %v211
    %v213 = vsel %vm197, %v198, %v212
    %v214 = vld [vmem:[%s6] sm:$0xff]
    %v215 = vld [vmem:[%s6 + $0x8] sm:$0xff]
    %v216 = vld [vmem:[%s6 + $0x10] sm:$0xff]
    %v217 = vld [vmem:[%s6 + $0x18] sm:$0xff]
    %v218 = vld [vmem:[%s6 + $0x20] sm:$0xff]
    %v219 = vld [vmem:[%s6 + $0x28] sm:$0xff]
    %v220 = vld [vmem:[%s6 + $0x30] sm:$0xff]
    %v221 = vld [vmem:[%s6 + $0x38] sm:$0xff]
    %v222 = vld [vmem:[%s6 + $0x40] sm:$0xff]
    %v223 = vld [vmem:[%s6 + $0x48] sm:$0xff]
    %v224 = vld [vmem:[%s6 + $0x50] sm:$0xff]
    %v225 = vld [vmem:[%s6 + $0x58] sm:$0xff]
    %v226 = vld [vmem:[%s6 + $0x60] sm:$0xff]
    %v227 = vld [vmem:[%s6 + $0x68] sm:$0xff]
    %v228 = vld [vmem:[%s6 + $0x70] sm:$0xff]
    %v229 = vld [vmem:[%s6 + $0x78] sm:$0xff]
    %230 = vmatpush.msra.mxu0 %v229
    %231 = vmatpush.msra.mxu0 %v228
    %232 = vmatpush.msra.mxu0 %v227
    %233 = vmatpush.msra.mxu0 %v226
    %234 = vmatpush.msra.mxu0 %v225
    %235 = vmatpush.msra.mxu0 %v224
    %236 = vmatpush.msra.mxu0 %v223
    %237 = vmatpush.msra.mxu0 %v222
    %238 = vmatpush.msra.mxu0 %v221
    %239 = vmatpush.msra.mxu0 %v220
    %240 = vmatpush.msra.mxu0 %v219
    %241 = vmatpush.msra.mxu0 %v218
    %242 = vmatpush.msra.mxu0 %v217
    %243 = vmatpush.msra.mxu0 %v216
    %244 = vmatpush.msra.mxu0 %v215
    %245 = vmatpush.msra.mxu0 %v214
    %246 = vmatmul.f32.gmra.mxu0 %v155
    %v247 = vpop.f32.mrf.mxu0
    %v248 = vadd.f32 0.0, %v247
    %249 = vdwg.mxu0
    %v250 = vld [vmem:[%s7] sm:$0xff]
    %v251 = vld [vmem:[%s7 + $0x8] sm:$0xff]
    %v252 = vld [vmem:[%s7 + $0x10] sm:$0xff]
    %v253 = vld [vmem:[%s7 + $0x18] sm:$0xff]
    %v254 = vld [vmem:[%s7 + $0x20] sm:$0xff]
    %v255 = vld [vmem:[%s7 + $0x28] sm:$0xff]
    %v256 = vld [vmem:[%s7 + $0x30] sm:$0xff]
    %v257 = vld [vmem:[%s7 + $0x38] sm:$0xff]
    %v258 = vld [vmem:[%s7 + $0x40] sm:$0xff]
    %v259 = vld [vmem:[%s7 + $0x48] sm:$0xff]
    %v260 = vld [vmem:[%s7 + $0x50] sm:$0xff]
    %v261 = vld [vmem:[%s7 + $0x58] sm:$0xff]
    %v262 = vld [vmem:[%s7 + $0x60] sm:$0xff]
    %v263 = vld [vmem:[%s7 + $0x68] sm:$0xff]
    %v264 = vld [vmem:[%s7 + $0x70] sm:$0xff]
    %v265 = vld [vmem:[%s7 + $0x78] sm:$0xff]
    %266 = vmatpush.msra.mxu0 %v265
    %267 = vmatpush.msra.mxu0 %v264
    %268 = vmatpush.msra.mxu0 %v263
    %269 = vmatpush.msra.mxu0 %v262
    %270 = vmatpush.msra.mxu0 %v261
    %271 = vmatpush.msra.mxu0 %v260
    %272 = vmatpush.msra.mxu0 %v259
    %273 = vmatpush.msra.mxu0 %v258
    %274 = vmatpush.msra.mxu0 %v257
    %275 = vmatpush.msra.mxu0 %v256
    %276 = vmatpush.msra.mxu0 %v255
    %277 = vmatpush.msra.mxu0 %v254
    %278 = vmatpush.msra.mxu0 %v253
    %279 = vmatpush.msra.mxu0 %v252
    %280 = vmatpush.msra.mxu0 %v251
    %281 = vmatpush.msra.mxu0 %v250
    %282 = vmatmul.f32.gmra.mxu0 %v155
    %v283 = vpop.f32.mrf.mxu0
    %v284 = vadd.f32 0.0, %v283
    %285 = vdwg.mxu0
    %v286 = vmul.f32 %v213, %v155
    %v287 = vld [vmem:[%s9] sm:$0xff]
    %v288 = vld [vmem:[%s9 + $0x8] sm:$0xff]
    %289 = vxpose.xlu0.b32.start [1/16] %v248, 128
    %290 = vxpose.xlu0.b32.cont [2/16] 0.0, 128
    %291 = vxpose.xlu0.b32.cont [3/16] 0.0, 128
    %292 = vxpose.xlu0.b32.cont [4/16] 0.0, 128
    %293 = vxpose.xlu0.b32.cont [5/16] 0.0, 128
    %294 = vxpose.xlu0.b32.cont [6/16] 0.0, 128
    %295 = vxpose.xlu0.b32.cont [7/16] 0.0, 128
    %296 = vxpose.xlu0.b32.cont [8/16] 0.0, 128
    %297 = vxpose.xlu0.b32.cont [9/16] 0.0, 128
    %298 = vxpose.xlu0.b32.cont [10/16] 0.0, 128
    %299 = vxpose.xlu0.b32.cont [11/16] 0.0, 128
    %300 = vxpose.xlu0.b32.cont [12/16] 0.0, 128
    %301 = vxpose.xlu0.b32.cont [13/16] 0.0, 128
    %302 = vxpose.xlu0.b32.cont [14/16] 0.0, 128
    %303 = vxpose.xlu0.b32.cont [15/16] 0.0, 128
    %304 = vxpose.xlu0.b32.end [16/16] 0.0, 128
    %v305 = vpop.trf.xlu0
    %v306 = vpop.trf.xlu0
    %v307 = vpop.trf.xlu0
    %v308 = vpop.trf.xlu0
    %v309 = vpop.trf.xlu0
    %v310 = vpop.trf.xlu0
    %v311 = vpop.trf.xlu0
    %v312 = vpop.trf.xlu0
    %v313 = vpop.trf.xlu0
    %v314 = vpop.trf.xlu0
    %v315 = vpop.trf.xlu0
    %v316 = vpop.trf.xlu0
    %v317 = vpop.trf.xlu0
    %v318 = vpop.trf.xlu0
    %v319 = vpop.trf.xlu0
    %v320 = vpop.trf.xlu0
    %322 = vrot.lane.b32.xlu0 %v248, 112
    %v323 = vpop.permute.xlu0 %322
    %325 = vxpose.xlu0.b32.start [1/16] %v323, 128
    %326 = vxpose.xlu0.b32.cont [2/16] 0.0, 128
    %327 = vxpose.xlu0.b32.cont [3/16] 0.0, 128
    %328 = vxpose.xlu0.b32.cont [4/16] 0.0, 128
    %329 = vxpose.xlu0.b32.cont [5/16] 0.0, 128
    %330 = vxpose.xlu0.b32.cont [6/16] 0.0, 128
    %331 = vxpose.xlu0.b32.cont [7/16] 0.0, 128
    %332 = vxpose.xlu0.b32.cont [8/16] 0.0, 128
    %333 = vxpose.xlu0.b32.cont [9/16] 0.0, 128
    %334 = vxpose.xlu0.b32.cont [10/16] 0.0, 128
    %335 = vxpose.xlu0.b32.cont [11/16] 0.0, 128
    %336 = vxpose.xlu0.b32.cont [12/16] 0.0, 128
    %337 = vxpose.xlu0.b32.cont [13/16] 0.0, 128
    %338 = vxpose.xlu0.b32.cont [14/16] 0.0, 128
    %339 = vxpose.xlu0.b32.cont [15/16] 0.0, 128
    %340 = vxpose.xlu0.b32.end [16/16] 0.0, 128
    %v341 = vpop.trf.xlu0
    %v342 = vpop.trf.xlu0
    %v343 = vpop.trf.xlu0
    %v344 = vpop.trf.xlu0
    %v345 = vpop.trf.xlu0
    %v346 = vpop.trf.xlu0
    %v347 = vpop.trf.xlu0
    %v348 = vpop.trf.xlu0
    %v349 = vpop.trf.xlu0
    %v350 = vpop.trf.xlu0
    %v351 = vpop.trf.xlu0
    %v352 = vpop.trf.xlu0
    %v353 = vpop.trf.xlu0
    %v354 = vpop.trf.xlu0
    %v355 = vpop.trf.xlu0
    %v356 = vpop.trf.xlu0
    %357 = vxpose.xlu0.b32.start [1/16] %v284, 128
    %358 = vxpose.xlu0.b32.cont [2/16] 0.0, 128
    %359 = vxpose.xlu0.b32.cont [3/16] 0.0, 128
    %360 = vxpose.xlu0.b32.cont [4/16] 0.0, 128
    %361 = vxpose.xlu0.b32.cont [5/16] 0.0, 128
    %362 = vxpose.xlu0.b32.cont [6/16] 0.0, 128
    %363 = vxpose.xlu0.b32.cont [7/16] 0.0, 128
    %364 = vxpose.xlu0.b32.cont [8/16] 0.0, 128
    %365 = vxpose.xlu0.b32.cont [9/16] 0.0, 128
    %366 = vxpose.xlu0.b32.cont [10/16] 0.0, 128
    %367 = vxpose.xlu0.b32.cont [11/16] 0.0, 128
    %368 = vxpose.xlu0.b32.cont [12/16] 0.0, 128
    %369 = vxpose.xlu0.b32.cont [13/16] 0.0, 128
    %370 = vxpose.xlu0.b32.cont [14/16] 0.0, 128
    %371 = vxpose.xlu0.b32.cont [15/16] 0.0, 128
    %372 = vxpose.xlu0.b32.end [16/16] 0.0, 128
    %v373 = vpop.trf.xlu0
    %v374 = vpop.trf.xlu0
    %v375 = vpop.trf.xlu0
    %v376 = vpop.trf.xlu0
    %v377 = vpop.trf.xlu0
    %v378 = vpop.trf.xlu0
    %v379 = vpop.trf.xlu0
    %v380 = vpop.trf.xlu0
    %v381 = vpop.trf.xlu0
    %v382 = vpop.trf.xlu0
    %v383 = vpop.trf.xlu0
    %v384 = vpop.trf.xlu0
    %v385 = vpop.trf.xlu0
    %v386 = vpop.trf.xlu0
    %v387 = vpop.trf.xlu0
    %v388 = vpop.trf.xlu0
    %390 = vrot.lane.b32.xlu0 %v284, 112
    %v391 = vpop.permute.xlu0 %390
    %393 = vxpose.xlu0.b32.start [1/16] %v391, 128
    %394 = vxpose.xlu0.b32.cont [2/16] 0.0, 128
    %395 = vxpose.xlu0.b32.cont [3/16] 0.0, 128
    %396 = vxpose.xlu0.b32.cont [4/16] 0.0, 128
    %397 = vxpose.xlu0.b32.cont [5/16] 0.0, 128
    %398 = vxpose.xlu0.b32.cont [6/16] 0.0, 128
    %399 = vxpose.xlu0.b32.cont [7/16] 0.0, 128
    %400 = vxpose.xlu0.b32.cont [8/16] 0.0, 128
    %401 = vxpose.xlu0.b32.cont [9/16] 0.0, 128
    %402 = vxpose.xlu0.b32.cont [10/16] 0.0, 128
    %403 = vxpose.xlu0.b32.cont [11/16] 0.0, 128
    %404 = vxpose.xlu0.b32.cont [12/16] 0.0, 128
    %405 = vxpose.xlu0.b32.cont [13/16] 0.0, 128
    %406 = vxpose.xlu0.b32.cont [14/16] 0.0, 128
    %407 = vxpose.xlu0.b32.cont [15/16] 0.0, 128
    %408 = vxpose.xlu0.b32.end [16/16] 0.0, 128
    %v409 = vpop.trf.xlu0
    %v410 = vpop.trf.xlu0
    %v411 = vpop.trf.xlu0
    %v412 = vpop.trf.xlu0
    %v413 = vpop.trf.xlu0
    %v414 = vpop.trf.xlu0
    %v415 = vpop.trf.xlu0
    %v416 = vpop.trf.xlu0
    %v417 = vpop.trf.xlu0
    %v418 = vpop.trf.xlu0
    %v419 = vpop.trf.xlu0
    %v420 = vpop.trf.xlu0
    %v421 = vpop.trf.xlu0
    %v422 = vpop.trf.xlu0
    %v423 = vpop.trf.xlu0
    %v424 = vpop.trf.xlu0
    %v425 = vperm.slane %v213, 0
    %v426 = vmul.f32 %v425, %v287
    %v427 = vmul.f32 %v425, %v288
    %v428 = vmul.f32 %v426, 1.442695
    %v429 = vpow.pop %v428
    %v430 = vmul.f32 %v427, 1.442695
    %v431 = vpow.pop %v430
    %432 = vst [vmem:[#allocation3] sm:$0xff] %v429
    %433 = vst [vmem:[#allocation3 + $0x8] sm:$0xff] %v431
    %435 = vset.pattern.permute.xlu0 0
    %436 = vperm.xlu0 %435, %v305
    %v437 = vpop.permute.xlu0 %436
    %440 = vset.pattern.permute.xlu0 0
    %441 = vperm.xlu0 %440, %v306
    %v442 = vpop.permute.xlu0 %441
    %445 = vset.pattern.permute.xlu0 0
    %446 = vperm.xlu0 %445, %v341
    %v447 = vpop.permute.xlu0 %446
    %450 = vset.pattern.permute.xlu0 0
    %451 = vperm.xlu0 %450, %v342
    %v452 = vpop.permute.xlu0 %451
    %v454 = vsel %vm57, %v437, %v447
    %v455 = vsel %vm57, %v442, %v452
    %457 = vset.pattern.permute.xlu0 0
    %458 = vperm.xlu0 %457, %v373
    %v459 = vpop.permute.xlu0 %458
    %462 = vset.pattern.permute.xlu0 0
    %463 = vperm.xlu0 %462, %v374
    %v464 = vpop.permute.xlu0 %463
    %467 = vset.pattern.permute.xlu0 0
    %468 = vperm.xlu0 %467, %v409
    %v469 = vpop.permute.xlu0 %468
    %472 = vset.pattern.permute.xlu0 0
    %473 = vperm.xlu0 %472, %v410
    %v474 = vpop.permute.xlu0 %473
    %v476 = vsel %vm57, %v459, %v469
    %v477 = vsel %vm57, %v464, %v474
    %478 = vst [vmem:[#allocation5] sm:$0xff] %v476
    %479 = vst [vmem:[#allocation5 + $0x8] sm:$0xff] %v477
    %v480 = vperm.slane %v286, 0
    %v481 = vmul.f32 %v480, %v454
    %v482 = vmul.f32 %v480, %v455
    %483 = vst [vmem:[#allocation4] sm:$0xff] %v481
    %484 = vst [vmem:[#allocation4 + $0x8] sm:$0xff] %v482
    %v485 = vperm.slane %v213, 1
    %v486 = vmul.f32 %v485, %v287
    %v487 = vmul.f32 %v485, %v288
    %v488 = vmul.f32 %v486, 1.442695
    %v489 = vpow.pop %v488
    %v490 = vmul.f32 %v487, 1.442695
    %v491 = vpow.pop %v490
    %s492 = scalar_lea.vmem [#allocation3], 16
    %493 = vst [vmem:[%s492] sm:$0xff] %v489
    %494 = vst [vmem:[%s492 + $0x8] sm:$0xff] %v491
    %495 = vset.pattern.permute.xlu0 1
    %496 = vperm.xlu0 %495, %v305
    %v497 = vpop.permute.xlu0 %496
    %499 = vset.pattern.permute.xlu0 1
    %500 = vperm.xlu0 %499, %v306
    %v501 = vpop.permute.xlu0 %500
    %503 = vset.pattern.permute.xlu0 1
    %504 = vperm.xlu0 %503, %v341
    %v505 = vpop.permute.xlu0 %504
    %507 = vset.pattern.permute.xlu0 1
    %508 = vperm.xlu0 %507, %v342
    %v509 = vpop.permute.xlu0 %508
    %v511 = vsel %vm57, %v497, %v505
    %v512 = vsel %vm57, %v501, %v509
    %513 = vset.pattern.permute.xlu0 1
    %514 = vperm.xlu0 %513, %v373
    %v515 = vpop.permute.xlu0 %514
    %517 = vset.pattern.permute.xlu0 1
    %518 = vperm.xlu0 %517, %v374
    %v519 = vpop.permute.xlu0 %518
    %521 = vset.pattern.permute.xlu0 1
    %522 = vperm.xlu0 %521, %v409
    %v523 = vpop.permute.xlu0 %522
    %525 = vset.pattern.permute.xlu0 1
    %526 = vperm.xlu0 %525, %v410
    %v527 = vpop.permute.xlu0 %526
    %v529 = vsel %vm57, %v515, %v523
    %v530 = vsel %vm57, %v519, %v527
    %s531 = scalar_lea.vmem [#allocation5], 16
    %532 = vst [vmem:[%s531] sm:$0xff] %v529
    %533 = vst [vmem:[%s531 + $0x8] sm:$0xff] %v530
    %v534 = vperm.slane %v286, 1
    %v535 = vmul.f32 %v534, %v511
    %v536 = vmul.f32 %v534, %v512
    %s537 = scalar_lea.vmem [#allocation4], 16
    %538 = vst [vmem:[%s537] sm:$0xff] %v535
    %539 = vst [vmem:[%s537 + $0x8] sm:$0xff] %v536
    %v540 = vperm.slane %v213, 2
    %v541 = vmul.f32 %v540, %v287
    %v542 = vmul.f32 %v540, %v288
    %v543 = vmul.f32 %v541, 1.442695
    %v544 = vpow.pop %v543
    %v545 = vmul.f32 %v542, 1.442695
    %v546 = vpow.pop %v545
    %s547 = scalar_lea.vmem [#allocation3], 32
    %548 = vst [vmem:[%s547] sm:$0xff] %v544
    %549 = vst [vmem:[%s547 + $0x8] sm:$0xff] %v546
    %550 = vset.pattern.permute.xlu0 2
    %551 = vperm.xlu0 %550, %v305
    %v552 = vpop.permute.xlu0 %551
    %554 = vset.pattern.permute.xlu0 2
    %555 = vperm.xlu0 %554, %v306
    %v556 = vpop.permute.xlu0 %555
    %558 = vset.pattern.permute.xlu0 2
    %559 = vperm.xlu0 %558, %v341
    %v560 = vpop.permute.xlu0 %559
    %562 = vset.pattern.permute.xlu0 2
    %563 = vperm.xlu0 %562, %v342
    %v564 = vpop.permute.xlu0 %563
    %v566 = vsel %vm57, %v552, %v560
    %v567 = vsel %vm57, %v556, %v564
    %568 = vset.pattern.permute.xlu0 2
    %569 = vperm.xlu0 %568, %v373
    %v570 = vpop.permute.xlu0 %569
    %572 = vset.pattern.permute.xlu0 2
    %573 = vperm.xlu0 %572, %v374
    %v574 = vpop.permute.xlu0 %573
    %576 = vset.pattern.permute.xlu0 2
    %577 = vperm.xlu0 %576, %v409
    %v578 = vpop.permute.xlu0 %577
    %580 = vset.pattern.permute.xlu0 2
    %581 = vperm.xlu0 %580, %v410
    %v582 = vpop.permute.xlu0 %581
    %v584 = vsel %vm57, %v570, %v578
    %v585 = vsel %vm57, %v574, %v582
    %s586 = scalar_lea.vmem [#allocation5], 32
    %587 = vst [vmem:[%s586] sm:$0xff] %v584
    %588 = vst [vmem:[%s586 + $0x8] sm:$0xff] %v585
    %v589 = vperm.slane %v286, 2
    %v590 = vmul.f32 %v589, %v566
    %v591 = vmul.f32 %v589, %v567
    %s592 = scalar_lea.vmem [#allocation4], 32
    %593 = vst [vmem:[%s592] sm:$0xff] %v590
    %594 = vst [vmem:[%s592 + $0x8] sm:$0xff] %v591
    %v595 = vperm.slane %v213, 3
    %v596 = vmul.f32 %v595, %v287
    %v597 = vmul.f32 %v595, %v288
    %v598 = vmul.f32 %v596, 1.442695
    %v599 = vpow.pop %v598
    %v600 = vmul.f32 %v597, 1.442695
    %v601 = vpow.pop %v600
    %s602 = scalar_lea.vmem [#allocation3], 48
    %603 = vst [vmem:[%s602] sm:$0xff] %v599
    %604 = vst [vmem:[%s602 + $0x8] sm:$0xff] %v601
    %605 = vset.pattern.permute.xlu0 3
    %606 = vperm.xlu0 %605, %v305
    %v607 = vpop.permute.xlu0 %606
    %609 = vset.pattern.permute.xlu0 3
    %610 = vperm.xlu0 %609, %v306
    %v611 = vpop.permute.xlu0 %610
    %613 = vset.pattern.permute.xlu0 3
    %614 = vperm.xlu0 %613, %v341
    %v615 = vpop.permute.xlu0 %614
    %617 = vset.pattern.permute.xlu0 3
    %618 = vperm.xlu0 %617, %v342
    %v619 = vpop.permute.xlu0 %618
    %v621 = vsel %vm57, %v607, %v615
    %v622 = vsel %vm57, %v611, %v619
    %623 = vset.pattern.permute.xlu0 3
    %624 = vperm.xlu0 %623, %v373
    %v625 = vpop.permute.xlu0 %624
    %627 = vset.pattern.permute.xlu0 3
    %628 = vperm.xlu0 %627, %v374
    %v629 = vpop.permute.xlu0 %628
    %631 = vset.pattern.permute.xlu0 3
    %632 = vperm.xlu0 %631, %v409
    %v633 = vpop.permute.xlu0 %632
    %635 = vset.pattern.permute.xlu0 3
    %636 = vperm.xlu0 %635, %v410
    %v637 = vpop.permute.xlu0 %636
    %v639 = vsel %vm57, %v625, %v633
    %v640 = vsel %vm57, %v629, %v637
    %s641 = scalar_lea.vmem [#allocation5], 48
    %642 = vst [vmem:[%s641] sm:$0xff] %v639
    %643 = vst [vmem:[%s641 + $0x8] sm:$0xff] %v640
    %v644 = vperm.slane %v286, 3
    %v645 = vmul.f32 %v644, %v621
    %v646 = vmul.f32 %v644, %v622
    %s647 = scalar_lea.vmem [#allocation4], 48
    %648 = vst [vmem:[%s647] sm:$0xff] %v645
    %649 = vst [vmem:[%s647 + $0x8] sm:$0xff] %v646
    %v650 = vperm.slane %v213, 4
    %v651 = vmul.f32 %v650, %v287
    %v652 = vmul.f32 %v650, %v288
    %v653 = vmul.f32 %v651, 1.442695
    %v654 = vpow.pop %v653
    %v655 = vmul.f32 %v652, 1.442695
    %v656 = vpow.pop %v655
    %s657 = scalar_lea.vmem [#allocation3], 64
    %658 = vst [vmem:[%s657] sm:$0xff] %v654
    %659 = vst [vmem:[%s657 + $0x8] sm:$0xff] %v656
    %660 = vset.pattern.permute.xlu0 4
    %661 = vperm.xlu0 %660, %v305
    %v662 = vpop.permute.xlu0 %661
    %664 = vset.pattern.permute.xlu0 4
    %665 = vperm.xlu0 %664, %v306
    %v666 = vpop.permute.xlu0 %665
    %668 = vset.pattern.permute.xlu0 4
    %669 = vperm.xlu0 %668, %v341
    %v670 = vpop.permute.xlu0 %669
    %672 = vset.pattern.permute.xlu0 4
    %673 = vperm.xlu0 %672, %v342
    %v674 = vpop.permute.xlu0 %673
    %v676 = vsel %vm57, %v662, %v670
    %v677 = vsel %vm57, %v666, %v674
    %678 = vset.pattern.permute.xlu0 4
    %679 = vperm.xlu0 %678, %v373
    %v680 = vpop.permute.xlu0 %679
    %682 = vset.pattern.permute.xlu0 4
    %683 = vperm.xlu0 %682, %v374
    %v684 = vpop.permute.xlu0 %683
    %686 = vset.pattern.permute.xlu0 4
    %687 = vperm.xlu0 %686, %v409
    %v688 = vpop.permute.xlu0 %687
    %690 = vset.pattern.permute.xlu0 4
    %691 = vperm.xlu0 %690, %v410
    %v692 = vpop.permute.xlu0 %691
    %v694 = vsel %vm57, %v680, %v688
    %v695 = vsel %vm57, %v684, %v692
    %s696 = scalar_lea.vmem [#allocation5], 64
    %697 = vst [vmem:[%s696] sm:$0xff] %v694
    %698 = vst [vmem:[%s696 + $0x8] sm:$0xff] %v695
    %v699 = vperm.slane %v286, 4
    %v700 = vmul.f32 %v699, %v676
    %v701 = vmul.f32 %v699, %v677
    %s702 = scalar_lea.vmem [#allocation4], 64
    %703 = vst [vmem:[%s702] sm:$0xff] %v700
    %704 = vst [vmem:[%s702 + $0x8] sm:$0xff] %v701
    %v705 = vperm.slane %v213, 5
    %v706 = vmul.f32 %v705, %v287
    %v707 = vmul.f32 %v705, %v288
    %v708 = vmul.f32 %v706, 1.442695
    %v709 = vpow.pop %v708
    %v710 = vmul.f32 %v707, 1.442695
    %v711 = vpow.pop %v710
    %s712 = scalar_lea.vmem [#allocation3], 80
    %713 = vst [vmem:[%s712] sm:$0xff] %v709
    %714 = vst [vmem:[%s712 + $0x8] sm:$0xff] %v711
    %715 = vset.pattern.permute.xlu0 5
    %716 = vperm.xlu0 %715, %v305
    %v717 = vpop.permute.xlu0 %716
    %719 = vset.pattern.permute.xlu0 5
    %720 = vperm.xlu0 %719, %v306
    %v721 = vpop.permute.xlu0 %720
    %723 = vset.pattern.permute.xlu0 5
    %724 = vperm.xlu0 %723, %v341
    %v725 = vpop.permute.xlu0 %724
    %727 = vset.pattern.permute.xlu0 5
    %728 = vperm.xlu0 %727, %v342
    %v729 = vpop.permute.xlu0 %728
    %v731 = vsel %vm57, %v717, %v725
    %v732 = vsel %vm57, %v721, %v729
    %733 = vset.pattern.permute.xlu0 5
    %734 = vperm.xlu0 %733, %v373
    %v735 = vpop.permute.xlu0 %734
    %737 = vset.pattern.permute.xlu0 5
    %738 = vperm.xlu0 %737, %v374
    %v739 = vpop.permute.xlu0 %738
    %741 = vset.pattern.permute.xlu0 5
    %742 = vperm.xlu0 %741, %v409
    %v743 = vpop.permute.xlu0 %742
    %745 = vset.pattern.permute.xlu0 5
    %746 = vperm.xlu0 %745, %v410
    %v747 = vpop.permute.xlu0 %746
    %v749 = vsel %vm57, %v735, %v743
    %v750 = vsel %vm57, %v739, %v747
    %s751 = scalar_lea.vmem [#allocation5], 80
    %752 = vst [vmem:[%s751] sm:$0xff] %v749
    %753 = vst [vmem:[%s751 + $0x8] sm:$0xff] %v750
    %v754 = vperm.slane %v286, 5
    %v755 = vmul.f32 %v754, %v731
    %v756 = vmul.f32 %v754, %v732
    %s757 = scalar_lea.vmem [#allocation4], 80
    %758 = vst [vmem:[%s757] sm:$0xff] %v755
    %759 = vst [vmem:[%s757 + $0x8] sm:$0xff] %v756
    %v760 = vperm.slane %v213, 6
    %v761 = vmul.f32 %v760, %v287
    %v762 = vmul.f32 %v760, %v288
    %v763 = vmul.f32 %v761, 1.442695
    %v764 = vpow.pop %v763
    %v765 = vmul.f32 %v762, 1.442695
    %v766 = vpow.pop %v765
    %s767 = scalar_lea.vmem [#allocation3], 96
    %768 = vst [vmem:[%s767] sm:$0xff] %v764
    %769 = vst [vmem:[%s767 + $0x8] sm:$0xff] %v766
    %770 = vset.pattern.permute.xlu0 6
    %771 = vperm.xlu0 %770, %v305
    %v772 = vpop.permute.xlu0 %771
    %774 = vset.pattern.permute.xlu0 6
    %775 = vperm.xlu0 %774, %v306
    %v776 = vpop.permute.xlu0 %775
    %778 = vset.pattern.permute.xlu0 6
    %779 = vperm.xlu0 %778, %v341
    %v780 = vpop.permute.xlu0 %779
    %782 = vset.pattern.permute.xlu0 6
    %783 = vperm.xlu0 %782, %v342
    %v784 = vpop.permute.xlu0 %783
    %v786 = vsel %vm57, %v772, %v780
    %v787 = vsel %vm57, %v776, %v784
    %788 = vset.pattern.permute.xlu0 6
    %789 = vperm.xlu0 %788, %v373
    %v790 = vpop.permute.xlu0 %789
    %792 = vset.pattern.permute.xlu0 6
    %793 = vperm.xlu0 %792, %v374
    %v794 = vpop.permute.xlu0 %793
    %796 = vset.pattern.permute.xlu0 6
    %797 = vperm.xlu0 %796, %v409
    %v798 = vpop.permute.xlu0 %797
    %800 = vset.pattern.permute.xlu0 6
    %801 = vperm.xlu0 %800, %v410
    %v802 = vpop.permute.xlu0 %801
    %v804 = vsel %vm57, %v790, %v798
    %v805 = vsel %vm57, %v794, %v802
    %s806 = scalar_lea.vmem [#allocation5], 96
    %807 = vst [vmem:[%s806] sm:$0xff] %v804
    %808 = vst [vmem:[%s806 + $0x8] sm:$0xff] %v805
    %v809 = vperm.slane %v286, 6
    %v810 = vmul.f32 %v809, %v786
    %v811 = vmul.f32 %v809, %v787
    %s812 = scalar_lea.vmem [#allocation4], 96
    %813 = vst [vmem:[%s812] sm:$0xff] %v810
    %814 = vst [vmem:[%s812 + $0x8] sm:$0xff] %v811
    %v815 = vperm.slane %v213, 7
    %v816 = vmul.f32 %v815, %v287
    %v817 = vmul.f32 %v815, %v288
    %v818 = vmul.f32 %v816, 1.442695
    %v819 = vpow.pop %v818
    %v820 = vmul.f32 %v817, 1.442695
    %v821 = vpow.pop %v820
    %s822 = scalar_lea.vmem [#allocation3], 112
    %823 = vst [vmem:[%s822] sm:$0xff] %v819
    %824 = vst [vmem:[%s822 + $0x8] sm:$0xff] %v821
    %825 = vset.pattern.permute.xlu0 7
    %826 = vperm.xlu0 %825, %v305
    %v827 = vpop.permute.xlu0 %826
    %829 = vset.pattern.permute.xlu0 7
    %830 = vperm.xlu0 %829, %v306
    %v831 = vpop.permute.xlu0 %830
    %833 = vset.pattern.permute.xlu0 7
    %834 = vperm.xlu0 %833, %v341
    %v835 = vpop.permute.xlu0 %834
    %837 = vset.pattern.permute.xlu0 7
    %838 = vperm.xlu0 %837, %v342
    %v839 = vpop.permute.xlu0 %838
    %v841 = vsel %vm57, %v827, %v835
    %v842 = vsel %vm57, %v831, %v839
    %843 = vset.pattern.permute.xlu0 7
    %844 = vperm.xlu0 %843, %v373
    %v845 = vpop.permute.xlu0 %844
    %847 = vset.pattern.permute.xlu0 7
    %848 = vperm.xlu0 %847, %v374
    %v849 = vpop.permute.xlu0 %848
    %851 = vset.pattern.permute.xlu0 7
    %852 = vperm.xlu0 %851, %v409
    %v853 = vpop.permute.xlu0 %852
    %855 = vset.pattern.permute.xlu0 7
    %856 = vperm.xlu0 %855, %v410
    %v857 = vpop.permute.xlu0 %856
    %v859 = vsel %vm57, %v845, %v853
    %v860 = vsel %vm57, %v849, %v857
    %s861 = scalar_lea.vmem [#allocation5], 112
    %862 = vst [vmem:[%s861] sm:$0xff] %v859
    %863 = vst [vmem:[%s861 + $0x8] sm:$0xff] %v860
    %v864 = vperm.slane %v286, 7
    %v865 = vmul.f32 %v864, %v841
    %v866 = vmul.f32 %v864, %v842
    %s867 = scalar_lea.vmem [#allocation4], 112
    %868 = vst [vmem:[%s867] sm:$0xff] %v865
    %869 = vst [vmem:[%s867 + $0x8] sm:$0xff] %v866
    %v870 = vld [vmem:[#allocation3] sm:$0xff]
    %v871 = vld [vmem:[#allocation3 + $0x8] sm:$0xff]
    %v872 = vmul.f32 %v870, 0.0
    %v873 = vmul.f32 %v871, 0.0
    %v874 = vld [vmem:[#allocation4] sm:$0xff]
    %v875 = vld [vmem:[#allocation4 + $0x8] sm:$0xff]
    %v876 = vadd.f32 %v872, %v874
    %v877 = vadd.f32 %v873, %v875
    %v878 = vld [vmem:[#allocation5] sm:$0xff]
    %v879 = vld [vmem:[#allocation5 + $0x8] sm:$0xff]
    %v880 = vmul.f32 %v876, %v878
    %v881 = vmul.f32 %v877, %v879
    %v882 = vadd.f32 %v880, %v881
    %v883 = vrot.slane %v882, 4
    %v884 = vadd.f32 %v882, %v883
    %v885 = vrot.slane %v884, 2
    %v886 = vadd.f32 %v884, %v885
    %v887 = vrot.slane %v886, 1
    %v888 = vadd.f32 %v886, %v887
    %889 = vst [vmem:[#allocation6] sm:$0x1] %v888
    %v890 = vld [vmem:[%s492] sm:$0xff]
    %v891 = vld [vmem:[%s492 + $0x8] sm:$0xff]
    %v892 = vmul.f32 %v890, %v876
    %v893 = vmul.f32 %v891, %v877
    %v894 = vld [vmem:[%s537] sm:$0xff]
    %v895 = vld [vmem:[%s537 + $0x8] sm:$0xff]
    %v896 = vadd.f32 %v892, %v894
    %v897 = vadd.f32 %v893, %v895
    %v898 = vld [vmem:[%s531] sm:$0xff]
    %v899 = vld [vmem:[%s531 + $0x8] sm:$0xff]
    %v900 = vmul.f32 %v896, %v898
    %v901 = vmul.f32 %v897, %v899
    %v902 = vadd.f32 %v900, %v901
    %v903 = vrot.slane %v902, 4
    %v904 = vadd.f32 %v902, %v903
    %v905 = vrot.slane %v904, 2
    %v906 = vadd.f32 %v904, %v905
    %v907 = vrot.slane %v906, 1
    %v908 = vadd.f32 %v906, %v907
    %909 = vst [vmem:[#allocation6 + $0x1] sm:$0x1] %v908
    %v910 = vld [vmem:[%s547] sm:$0xff]
    %v911 = vld [vmem:[%s547 + $0x8] sm:$0xff]
    %v912 = vmul.f32 %v910, %v896
    %v913 = vmul.f32 %v911, %v897
    %v914 = vld [vmem:[%s592] sm:$0xff]
    %v915 = vld [vmem:[%s592 + $0x8] sm:$0xff]
    %v916 = vadd.f32 %v912, %v914
    %v917 = vadd.f32 %v913, %v915
    %v918 = vld [vmem:[%s586] sm:$0xff]
    %v919 = vld [vmem:[%s586 + $0x8] sm:$0xff]
    %v920 = vmul.f32 %v916, %v918
    %v921 = vmul.f32 %v917, %v919
    %v922 = vadd.f32 %v920, %v921
    %v923 = vrot.slane %v922, 4
    %v924 = vadd.f32 %v922, %v923
    %v925 = vrot.slane %v924, 2
    %v926 = vadd.f32 %v924, %v925
    %v927 = vrot.slane %v926, 1
    %v928 = vadd.f32 %v926, %v927
    %929 = vst [vmem:[#allocation6 + $0x2] sm:$0x1] %v928
    %v930 = vld [vmem:[%s602] sm:$0xff]
    %v931 = vld [vmem:[%s602 + $0x8] sm:$0xff]
    %v932 = vmul.f32 %v930, %v916
    %v933 = vmul.f32 %v931, %v917
    %v934 = vld [vmem:[%s647] sm:$0xff]
    %v935 = vld [vmem:[%s647 + $0x8] sm:$0xff]
    %v936 = vadd.f32 %v932, %v934
    %v937 = vadd.f32 %v933, %v935
    %v938 = vld [vmem:[%s641] sm:$0xff]
    %v939 = vld [vmem:[%s641 + $0x8] sm:$0xff]
    %v940 = vmul.f32 %v936, %v938
    %v941 = vmul.f32 %v937, %v939
    %v942 = vadd.f32 %v940, %v941
    %v943 = vrot.slane %v942, 4
    %v944 = vadd.f32 %v942, %v943
    %v945 = vrot.slane %v944, 2
    %v946 = vadd.f32 %v944, %v945
    %v947 = vrot.slane %v946, 1
    %v948 = vadd.f32 %v946, %v947
    %949 = vst [vmem:[#allocation6 + $0x3] sm:$0x1] %v948
    %v950 = vld [vmem:[%s657] sm:$0xff]
    %v951 = vld [vmem:[%s657 + $0x8] sm:$0xff]
    %v952 = vmul.f32 %v950, %v936
    %v953 = vmul.f32 %v951, %v937
    %v954 = vld [vmem:[%s702] sm:$0xff]
    %v955 = vld [vmem:[%s702 + $0x8] sm:$0xff]
    %v956 = vadd.f32 %v952, %v954
    %v957 = vadd.f32 %v953, %v955
    %v958 = vld [vmem:[%s696] sm:$0xff]
    %v959 = vld [vmem:[%s696 + $0x8] sm:$0xff]
    %v960 = vmul.f32 %v956, %v958
    %v961 = vmul.f32 %v957, %v959
    %v962 = vadd.f32 %v960, %v961
    %v963 = vrot.slane %v962, 4
    %v964 = vadd.f32 %v962, %v963
    %v965 = vrot.slane %v964, 2
    %v966 = vadd.f32 %v964, %v965
    %v967 = vrot.slane %v966, 1
    %v968 = vadd.f32 %v966, %v967
    %969 = vst [vmem:[#allocation6 + $0x4] sm:$0x1] %v968
    %v970 = vld [vmem:[%s712] sm:$0xff]
    %v971 = vld [vmem:[%s712 + $0x8] sm:$0xff]
    %v972 = vmul.f32 %v970, %v956
    %v973 = vmul.f32 %v971, %v957
    %v974 = vld [vmem:[%s757] sm:$0xff]
    %v975 = vld [vmem:[%s757 + $0x8] sm:$0xff]
    %v976 = vadd.f32 %v972, %v974
    %v977 = vadd.f32 %v973, %v975
    %v978 = vld [vmem:[%s751] sm:$0xff]
    %v979 = vld [vmem:[%s751 + $0x8] sm:$0xff]
    %v980 = vmul.f32 %v976, %v978
    %v981 = vmul.f32 %v977, %v979
    %v982 = vadd.f32 %v980, %v981
    %v983 = vrot.slane %v982, 4
    %v984 = vadd.f32 %v982, %v983
    %v985 = vrot.slane %v984, 2
    %v986 = vadd.f32 %v984, %v985
    %v987 = vrot.slane %v986, 1
    %v988 = vadd.f32 %v986, %v987
    %989 = vst [vmem:[#allocation6 + $0x5] sm:$0x1] %v988
    %v990 = vld [vmem:[%s767] sm:$0xff]
    %v991 = vld [vmem:[%s767 + $0x8] sm:$0xff]
    %v992 = vmul.f32 %v990, %v976
    %v993 = vmul.f32 %v991, %v977
    %v994 = vld [vmem:[%s812] sm:$0xff]
    %v995 = vld [vmem:[%s812 + $0x8] sm:$0xff]
    %v996 = vadd.f32 %v992, %v994
    %v997 = vadd.f32 %v993, %v995
    %v998 = vld [vmem:[%s806] sm:$0xff]
    %v999 = vld [vmem:[%s806 + $0x8] sm:$0xff]
    %v1000 = vmul.f32 %v996, %v998
    %v1001 = vmul.f32 %v997, %v999
    %v1002 = vadd.f32 %v1000, %v1001
    %v1003 = vrot.slane %v1002, 4
    %v1004 = vadd.f32 %v1002, %v1003
    %v1005 = vrot.slane %v1004, 2
    %v1006 = vadd.f32 %v1004, %v1005
    %v1007 = vrot.slane %v1006, 1
    %v1008 = vadd.f32 %v1006, %v1007
    %1009 = vst [vmem:[#allocation6 + $0x6] sm:$0x1] %v1008
    %v1010 = vld [vmem:[%s822] sm:$0xff]
    %v1011 = vld [vmem:[%s822 + $0x8] sm:$0xff]
    %v1012 = vmul.f32 %v1010, %v996
    %v1013 = vmul.f32 %v1011, %v997
    %v1014 = vld [vmem:[%s867] sm:$0xff]
    %v1015 = vld [vmem:[%s867 + $0x8] sm:$0xff]
    %v1016 = vadd.f32 %v1012, %v1014
    %v1017 = vadd.f32 %v1013, %v1015
    %v1018 = vld [vmem:[%s861] sm:$0xff]
    %v1019 = vld [vmem:[%s861 + $0x8] sm:$0xff]
    %v1020 = vmul.f32 %v1016, %v1018
    %v1021 = vmul.f32 %v1017, %v1019
    %v1022 = vadd.f32 %v1020, %v1021
    %v1023 = vrot.slane %v1022, 4
    %v1024 = vadd.f32 %v1022, %v1023
    %v1025 = vrot.slane %v1024, 2
    %v1026 = vadd.f32 %v1024, %v1025
    %v1027 = vrot.slane %v1026, 1
    %v1028 = vadd.f32 %v1026, %v1027
    %1029 = vst [vmem:[#allocation6 + $0x7] sm:$0x1] %v1028
    %v1030 = vld [vmem:[#allocation6] sm:$0xff]
    %v1031 = vld [vmem:[%s10] sm:$0x1]
    %v1033 = vperm.slane %v1031, 0
    %v1035 = vmul.f32 %v155, %v1033
    %v1036 = vadd.f32 %v1030, %v1035
    %v1037 = vxor.u32 %v107, 2147483648
    %v1038 = vmul.f32 %v1037, 1.442695
    %v1039 = vpow.pop %v1038
    %v1040 = vadd.f32 %v1039, 1.0
    %v1041 = vrcp.pop %v1040
    %v1042 = vmul.f32 %v1040, %v1041
    %v1043 = vsub.f32 1.0, %v1042
    %v1044 = vmul.f32 %v1041, %v1043
    %v1045 = vadd.f32 %v1041, %v1044
    %vm1046 = vweird.f32 %v1040
    %vm1047 = vweird.f32 %v1041
    %vm1048 = vmor %vm1046, %vm1047
    %v1049 = vsel %vm1048, %v1041, %v1045
    %v1050 = vand.u32 2147483647, %v1040
    %vm1051 = vcmp.eq.f32.partialorder %v1050, 8.507059e+37
    %v1052 = vand.u32 %v1040, 2147483648
    %v1053 = vor.u32 1.1754944e-38, %v1052
    %v1054 = vsel %vm1051, %v1053, %v1049
    %v1055 = vmul.f32 1.0, %v1054
    %v1056 = vmul.f32 %v107, %v1055
    %v1057 = vmul.f32 %v1036, %v1056
    %v1058 = vld [vmem:[%s11] sm:$0xff]
    %v1059 = vld [vmem:[%s11 + $0x8] sm:$0xff]
    %v1060 = vld [vmem:[%s11 + $0x10] sm:$0xff]
    %v1061 = vld [vmem:[%s11 + $0x18] sm:$0xff]
    %v1062 = vld [vmem:[%s11 + $0x20] sm:$0xff]
    %v1063 = vld [vmem:[%s11 + $0x28] sm:$0xff]
    %v1064 = vld [vmem:[%s11 + $0x30] sm:$0xff]
    %v1065 = vld [vmem:[%s11 + $0x38] sm:$0xff]
    %v1066 = vld [vmem:[%s11 + $0x40] sm:$0xff]
    %v1067 = vld [vmem:[%s11 + $0x48] sm:$0xff]
    %v1068 = vld [vmem:[%s11 + $0x50] sm:$0xff]
    %v1069 = vld [vmem:[%s11 + $0x58] sm:$0xff]
    %v1070 = vld [vmem:[%s11 + $0x60] sm:$0xff]
    %v1071 = vld [vmem:[%s11 + $0x68] sm:$0xff]
    %v1072 = vld [vmem:[%s11 + $0x70] sm:$0xff]
    %v1073 = vld [vmem:[%s11 + $0x78] sm:$0xff]
    %1074 = vmatpush.msra.mxu0 %v1073
    %1075 = vmatpush.msra.mxu0 %v1072
    %1076 = vmatpush.msra.mxu0 %v1071
    %1077 = vmatpush.msra.mxu0 %v1070
    %1078 = vmatpush.msra.mxu0 %v1069
    %1079 = vmatpush.msra.mxu0 %v1068
    %1080 = vmatpush.msra.mxu0 %v1067
    %1081 = vmatpush.msra.mxu0 %v1066
    %1082 = vmatpush.msra.mxu0 %v1065
    %1083 = vmatpush.msra.mxu0 %v1064
    %1084 = vmatpush.msra.mxu0 %v1063
    %1085 = vmatpush.msra.mxu0 %v1062
    %1086 = vmatpush.msra.mxu0 %v1061
    %1087 = vmatpush.msra.mxu0 %v1060
    %1088 = vmatpush.msra.mxu0 %v1059
    %1089 = vmatpush.msra.mxu0 %v1058
    %1090 = vmatmul.f32.gmra.mxu0 %v1057
    %v1091 = vpop.f32.mrf.mxu0
    %v1092 = vadd.f32 %v48, %v1091
    %1093 = vdwg.mxu0
    %v1094 = vmul.f32 %v1092, %v1092
    %v1095 = vld [vmem:[%s13] sm:$0xff]
    %v1096 = vld [vmem:[%s13 + $0x8] sm:$0xff]
    %v1097 = vld [vmem:[%s13 + $0x10] sm:$0xff]
    %v1098 = vld [vmem:[%s13 + $0x18] sm:$0xff]
    %v1099 = vld [vmem:[%s13 + $0x20] sm:$0xff]
    %v1100 = vld [vmem:[%s13 + $0x28] sm:$0xff]
    %v1101 = vld [vmem:[%s13 + $0x30] sm:$0xff]
    %v1102 = vld [vmem:[%s13 + $0x38] sm:$0xff]
    %v1104 = vsel %vm57, %v1094, 0
    %1106 = vmatpush.msra.mxu0 0.0
    %1107 = vmatpush.msra.mxu0 0.0
    %1108 = vmatpush.msra.mxu0 0.0
    %1109 = vmatpush.msra.mxu0 0.0
    %1110 = vmatpush.msra.mxu0 0.0
    %1111 = vmatpush.msra.mxu0 0.0
    %1112 = vmatpush.msra.mxu0 0.0
    %1113 = vmatpush.msra.mxu0 0.0
    %1114 = vmatpush.msra.mxu0 %v1102
    %1115 = vmatpush.msra.mxu0 %v1101
    %1116 = vmatpush.msra.mxu0 %v1100
    %1117 = vmatpush.msra.mxu0 %v1099
    %1118 = vmatpush.msra.mxu0 %v1098
    %1119 = vmatpush.msra.mxu0 %v1097
    %1120 = vmatpush.msra.mxu0 %v1096
    %1121 = vmatpush.msra.mxu0 %v1095
    %1122 = vmatmul.f32.gmra.mxu0 %v1104
    %v1123 = vpop.f32.mrf.mxu0
    %v1124 = vadd.f32 1e-05, %v1123
    %1125 = vdwg.mxu0
    %v1126 = vrsqrt.pop %v1124
    %v1127 = vmul.f32 %v1126, %v1124
    %v1128 = vmul.f32 %v1127, %v1126
    %v1129 = vmul.f32 0.5, %v1128
    %v1130 = vsub.f32 1.5, %v1129
    %v1131 = vmul.f32 %v1126, %v1130
    %vm1132 = vweird.f32 %v1124
    %vm1133 = vweird.f32 %v1126
    %vm1134 = vmor %vm1132, %vm1133
    %v1135 = vsel %vm1134, %v1126, %v1131
    %v1136 = vmul.f32 %v1092, %v1135
    %v1137 = vld [vmem:[%s12] sm:$0x1]
    %v1139 = vperm.slane %v1137, 0
    %v1141 = vmul.f32 %v1136, %v1139
    %1142 = vst.msk [vmem:[#allocation7] sm:$0xff] %vm57, %v1141
    // Predicated region
    $region58: #{tpu_custom_call.1} parent=1 // pred_check
      _
    $region59: #{tpu_custom_call.1} parent=1 // pred_check_branch
      %1144 = sbr.rel (0) target = $region61
    $region60: #{tpu_custom_call.1} parent=1 // pred_region
      %1146 = vsyncadd [#allocation8], 0
      %s1148 = sshll.u32 [#allocation7], 4
      %s1149 = int_to_ptr.vmem [resolvable:$true] %s1148
      %s1150 = sshll.u32 %s14, 4
      %s1151 = int_to_ptr.hbm [resolvable:$true] %s1150
      %1153 = dma.vmem_to_hbm [thread:$0]  %s1149, 128, %s1151, [#allocation8]
    $region61: #{tpu_custom_call.1} parent=1 // pred_fallthru
      _
    // Predicated region
    $region62: #{tpu_custom_call.1} parent=1 // pred_check
      _
    $region63: #{tpu_custom_call.1} parent=1 // pred_check_branch
      %1155 = sbr.rel (0) target = $region65
    $region64: #{tpu_custom_call.1} parent=1 // pred_region
      %1157 = dma.done [#allocation8], 128
    $region65: #{tpu_custom_call.1} parent=1 // pred_fallthru
      _
    %1158 = vsyncpa [#allocation8], 1

</llo_original>
